<compile_context>
chip_gen: v5e
topology: v5e:2x2
jax: 0.10.0
libtpu: 0.0.40
codegen_flags: <defaults>
</compile_context>

<pallas_src>
import math

import jax
import jax.numpy as jnp
from jax.experimental import pallas as pl
from jax.experimental.pallas import tpu as pltpu


def _critic_q_kernel(x_ref, w1_ref, b1_ref, w2_ref, b2_ref, w3_ref, b3_ref, o_ref):
    """Fused 3-layer ensemble MLP, single invocation (no grid).

    x_ref  : (B, D)      shared input (state ++ action ++ log(uncertain))
    w1_ref : (D, E*H)    layer-1 weights, ensemble members side by side
    b1_ref : (1, E*H)
    w2_ref : (E, H, H)
    b2_ref : (E, 1, H)
    w3_ref : (E, 1, H)   layer-3 weight rows ((E, H, 1) transposed)
    b3_ref : (1, E)
    o_ref  : (B, E)      lane-dense output; wrapper reshapes to (E, B, 1)
    """
    B = x_ref.shape[0]
    E, H, _ = w2_ref.shape

    x = x_ref[...]                                                      # (B, D)

    # Layer 1 fused across the ensemble: one lane-dense MXU matmul.
    h1_all = jnp.dot(x, w1_ref[...], preferred_element_type=jnp.float32)
    h1_all = jnp.maximum(h1_all + b1_ref[...], 0.0)                     # (B, E*H)

    col = jax.lax.broadcasted_iota(jnp.int32, (B, E), 1)
    q = jnp.zeros((B, E), dtype=jnp.float32)

    # E (ensemble size) is small; unroll statically.
    for e in range(E):
        h1_e = h1_all[:, e * H:(e + 1) * H]                  # lane-aligned (H=256)
        h2_e = jnp.dot(h1_e, w2_ref[e], preferred_element_type=jnp.float32)
        h2_e = jnp.maximum(h2_e + b2_ref[e], 0.0)            # (B, H)
        # Layer 3 (out dim 1): VPU multiply + lane reduction instead of an
        # N=1 MXU matmul.
        r_e = jnp.sum(h2_e * w3_ref[e], axis=-1, keepdims=True)         # (B, 1)
        q = q + jnp.where(col == e, r_e, 0.0)

    o_ref[...] = (q + b3_ref[...]).astype(o_ref.dtype)


@jax.jit
def critic_q_forward(state, action, uncertain, params):
    """Pallas forward of Critic_Q.

    state: (B, state_dim), action: (B, action_dim), uncertain: (B, 1) > 0.
    params: dict with w1,b1,w2,b2,w3,b3 (ensemble-major shapes).
    Returns q: (E, B, 1), matching the PyTorch module.
    """
    w1, b1 = params["w1"], params["b1"]
    w2, b2 = params["w2"], params["b2"]
    w3, b3 = params["w3"], params["b3"]
    E, D, H = w1.shape
    B = state.shape[0]

    # Cheap glue, fused by XLA: concat + log.  The shared input is passed ONCE
    # (no (E, B, D) broadcast materialized in HBM).
    # TODO(synk): concat/log could be folded into the kernel by splitting w1's
    # rows; kept in the wrapper since the (B, D) slab is tiny.
    sau = jnp.concatenate(
        [state, action, jnp.log(uncertain)], axis=-1).astype(jnp.float32)   # (B, D)

    # Layer-1 weights laid out (D, E*H) so one matmul serves all members.
    w1_all = jnp.transpose(w1, (1, 0, 2)).reshape(D, E * H)
    b1_all = b1.reshape(1, E * H)
    b2r = b2.reshape(E, 1, H)
    w3r = jnp.transpose(w3, (0, 2, 1))                      # (E, 1, H)
    b3r = b3.reshape(1, E)

    flops = 2 * B * D * E * H + E * (2 * B * H * H) + E * (2 * B * H)
    bytes_accessed = 4 * (sau.size + w1_all.size + b1_all.size + w2.size
                          + b2r.size + w3r.size + b3r.size + B * E)

    q_be = pl.pallas_call(
        _critic_q_kernel,
        out_shape=jax.ShapeDtypeStruct((B, E), jnp.float32),
        in_specs=[pl.BlockSpec(memory_space=pltpu.MemorySpace.VMEM)] * 7,
        out_specs=pl.BlockSpec(memory_space=pltpu.MemorySpace.VMEM),
        cost_estimate=pl.CostEstimate(
            flops=flops, transcendentals=0, bytes_accessed=bytes_accessed),
    )(sau, w1_all, b1_all, w2, b2r, w3r, b3r)

    # (B, E) -> (E, B, 1) to match the PyTorch module's output layout.
    return jnp.transpose(q_be)[:, :, None]


def init_ensemble_fc(key, in_features, out_features, ensemble_size):
    """Mimics EnsembleFC.reset_parameters:
    kaiming_uniform_(a=sqrt(5)) with fan_in = in_features (size(-2)),
    bias ~ U(-1/sqrt(fan_in), 1/sqrt(fan_in))."""
    kw, kb = jax.random.split(key)
    a = math.sqrt(5.0)
    gain = math.sqrt(2.0 / (1.0 + a * a))            # leaky_relu gain
    std = gain / math.sqrt(in_features)
    bound_w = math.sqrt(3.0) * std                   # == 1/sqrt(in_features)
    w = jax.random.uniform(
        kw, (ensemble_size, in_features, out_features),
        minval=-bound_w, maxval=bound_w, dtype=jnp.float32)
    bound_b = 1.0 / math.sqrt(in_features)
    b = jax.random.uniform(
        kb, (ensemble_size, out_features),
        minval=-bound_b, maxval=bound_b, dtype=jnp.float32)
    return w, b


def init_critic_q(key, state_dim, action_dim, ensemble_size, hidden=256):
    in_dim = state_dim + action_dim + 1
    k1, k2, k3 = jax.random.split(key, 3)
    w1, b1 = init_ensemble_fc(k1, in_dim, hidden, ensemble_size)
    w2, b2 = init_ensemble_fc(k2, hidden, hidden, ensemble_size)
    w3, b3 = init_ensemble_fc(k3, hidden, 1, ensemble_size)
    return {"w1": w1, "b1": b1, "w2": w2, "b2": b2, "w3": w3, "b3": b3}


def critic_q_reference(state, action, uncertain, params):
    """Pure-JAX reference of the PyTorch forward, for correctness check."""
    E = params["w1"].shape[0]
    sau = jnp.concatenate([state, action, jnp.log(uncertain)], axis=-1)
    sau = jnp.broadcast_to(sau[None], (E,) + sau.shape)
    h = jnp.maximum(jnp.einsum("ebd,edh->ebh", sau, params["w1"])
                    + params["b1"][:, None, :], 0.0)
    h = jnp.maximum(jnp.einsum("ebd,edh->ebh", h, params["w2"])
                    + params["b2"][:, None, :], 0.0)
    q = (jnp.einsum("ebd,edh->ebh", h, params["w3"])
         + params["b3"][:, None, :])
    return q


if __name__ == "__main__":
    # Small but representative shapes.
    state_dim, action_dim, ensemble_size = 17, 6, 4
    batch = 64   # multiple of 8 sublanes; MXU rows are still the limiter at this size

    key = jax.random.PRNGKey(0)
    kp, ks, ka, ku = jax.random.split(key, 4)

    params = init_critic_q(kp, state_dim, action_dim, ensemble_size)

    state = jax.random.normal(ks, (batch, state_dim), dtype=jnp.float32)
    action = jax.random.normal(ka, (batch, action_dim), dtype=jnp.float32)
    # uncertain must be strictly positive (it gets .log()'d).
    uncertain = jax.random.uniform(ku, (batch, 1), minval=0.1, maxval=1.0,
                                   dtype=jnp.float32)

    q = critic_q_forward(state, action, uncertain, params)
    q = jax.block_until_ready(q)

    q_ref = critic_q_reference(state, action, uncertain, params)
    assert q.shape == (ensemble_size, batch, 1)
    assert jnp.allclose(q, q_ref, atol=1e-4, rtol=1e-4)

    print("KERNEL_OK")
</pallas_src>

<mosaic_0001>
module attributes {stable_mosaic.version = 11 : i64} {
  func.func @_critic_q_kernel(%arg0: memref<64x24xf32, #tpu.memory_space<vmem>>, %arg1: memref<24x1024xf32, #tpu.memory_space<vmem>>, %arg2: memref<1x1024xf32, #tpu.memory_space<vmem>>, %arg3: memref<4x256x256xf32, #tpu.memory_space<vmem>>, %arg4: memref<4x1x256xf32, #tpu.memory_space<vmem>>, %arg5: memref<4x1x256xf32, #tpu.memory_space<vmem>>, %arg6: memref<1x4xf32, #tpu.memory_space<vmem>>, %arg7: memref<64x4xf32, #tpu.memory_space<vmem>>) attributes {dimension_semantics = [], scalar_prefetch = 0 : i64, scratch_operands = 0 : i64, tpu.core_type = #tpu.core_type<tc>} {
    %c0 = arith.constant 0 : index
    %c0_0 = arith.constant 0 : index
    %0 = vector.load %arg0[%c0, %c0_0] : memref<64x24xf32, #tpu.memory_space<vmem>>, vector<64x24xf32>
    %c0_1 = arith.constant 0 : index
    %c0_2 = arith.constant 0 : index
    %1 = vector.load %arg1[%c0_1, %c0_2] : memref<24x1024xf32, #tpu.memory_space<vmem>>, vector<24x1024xf32>
    %cst = arith.constant dense<0.000000e+00> : vector<64x1024xf32>
    %2 = tpu.matmul %0, %1, %cst {dimension_numbers = #tpu.dot_dimension_numbers<[1], [0], [0], [1], [0, 0, 1, 1], [], []>} : vector<64x24xf32>, vector<24x1024xf32>, vector<64x1024xf32> -> vector<64x1024xf32>
    %c0_3 = arith.constant 0 : index
    %c0_4 = arith.constant 0 : index
    %3 = vector.load %arg2[%c0_3, %c0_4] : memref<1x1024xf32, #tpu.memory_space<vmem>>, vector<1x1024xf32>
    %4 = vector.broadcast %3 : vector<1x1024xf32> to vector<64x1024xf32>
    %5 = arith.addf %2, %4 : vector<64x1024xf32>
    %cst_5 = arith.constant 0.000000e+00 : f32
    %6 = vector.broadcast %cst_5 : f32 to vector<64x1024xf32>
    %7 = arith.maximumf %5, %6 : vector<64x1024xf32>
    %8 = tpu.iota {dimensions = array<i32: 1>} : vector<64x4xi32>
    %cst_6 = arith.constant 0.000000e+00 : f32
    %9 = vector.broadcast %cst_6 : f32 to vector<64x4xf32>
    %10 = vector.extract_strided_slice %7 {offsets = [0, 0], sizes = [64, 256], strides = [1, 1]} : vector<64x1024xf32> to vector<64x256xf32>
    %c0_7 = arith.constant 0 : index
    %c0_8 = arith.constant 0 : index
    %c0_9 = arith.constant 0 : index
    %11 = vector.load %arg3[%c0_7, %c0_8, %c0_9] : memref<4x256x256xf32, #tpu.memory_space<vmem>>, vector<1x256x256xf32>
    %12 = vector.shape_cast %11 : vector<1x256x256xf32> to vector<256x256xf32>
    %cst_10 = arith.constant dense<0.000000e+00> : vector<64x256xf32>
    %13 = tpu.matmul %10, %12, %cst_10 {dimension_numbers = #tpu.dot_dimension_numbers<[1], [0], [0], [1], [0, 0, 1, 1], [], []>} : vector<64x256xf32>, vector<256x256xf32>, vector<64x256xf32> -> vector<64x256xf32>
    %c0_11 = arith.constant 0 : index
    %c0_12 = arith.constant 0 : index
    %c0_13 = arith.constant 0 : index
    %14 = vector.load %arg4[%c0_11, %c0_12, %c0_13] : memref<4x1x256xf32, #tpu.memory_space<vmem>>, vector<1x1x256xf32>
    %15 = vector.shape_cast %14 : vector<1x1x256xf32> to vector<1x256xf32>
    %16 = vector.broadcast %15 : vector<1x256xf32> to vector<64x256xf32>
    %17 = arith.addf %13, %16 : vector<64x256xf32>
    %cst_14 = arith.constant 0.000000e+00 : f32
    %18 = vector.broadcast %cst_14 : f32 to vector<64x256xf32>
    %19 = arith.maximumf %17, %18 : vector<64x256xf32>
    %c0_15 = arith.constant 0 : index
    %c0_16 = arith.constant 0 : index
    %c0_17 = arith.constant 0 : index
    %20 = vector.load %arg5[%c0_15, %c0_16, %c0_17] : memref<4x1x256xf32, #tpu.memory_space<vmem>>, vector<1x1x256xf32>
    %21 = vector.shape_cast %20 : vector<1x1x256xf32> to vector<1x256xf32>
    %22 = vector.broadcast %21 : vector<1x256xf32> to vector<64x256xf32>
    %23 = arith.mulf %19, %22 : vector<64x256xf32>
    %cst_18 = arith.constant dense<0.000000e+00> : vector<64xf32>
    %24 = vector.multi_reduction <add>, %23, %cst_18 [1] : vector<64x256xf32> to vector<64xf32>
    %25 = vector.shape_cast %24 : vector<64xf32> to vector<64x1xf32>
    %c0_i32 = arith.constant 0 : i32
    %26 = vector.broadcast %c0_i32 : i32 to vector<64x4xi32>
    %27 = arith.cmpi eq, %8, %26 : vector<64x4xi32>
    %cst_19 = arith.constant 0.000000e+00 : f32
    %28 = vector.shape_cast %25 : vector<64x1xf32> to vector<64x1xf32>
    %29 = vector.broadcast %28 : vector<64x1xf32> to vector<64x4xf32>
    %30 = vector.broadcast %cst_19 : f32 to vector<64x4xf32>
    %31 = arith.select %27, %29, %30 : vector<64x4xi1>, vector<64x4xf32>
    %32 = arith.addf %9, %31 : vector<64x4xf32>
    %33 = vector.extract_strided_slice %7 {offsets = [0, 256], sizes = [64, 256], strides = [1, 1]} : vector<64x1024xf32> to vector<64x256xf32>
    %c1 = arith.constant 1 : index
    %c0_20 = arith.constant 0 : index
    %c0_21 = arith.constant 0 : index
    %34 = vector.load %arg3[%c1, %c0_20, %c0_21] : memref<4x256x256xf32, #tpu.memory_space<vmem>>, vector<1x256x256xf32>
    %35 = vector.shape_cast %34 : vector<1x256x256xf32> to vector<256x256xf32>
    %cst_22 = arith.constant dense<0.000000e+00> : vector<64x256xf32>
    %36 = tpu.matmul %33, %35, %cst_22 {dimension_numbers = #tpu.dot_dimension_numbers<[1], [0], [0], [1], [0, 0, 1, 1], [], []>} : vector<64x256xf32>, vector<256x256xf32>, vector<64x256xf32> -> vector<64x256xf32>
    %c1_23 = arith.constant 1 : index
    %c0_24 = arith.constant 0 : index
    %c0_25 = arith.constant 0 : index
    %37 = vector.load %arg4[%c1_23, %c0_24, %c0_25] : memref<4x1x256xf32, #tpu.memory_space<vmem>>, vector<1x1x256xf32>
    %38 = vector.shape_cast %37 : vector<1x1x256xf32> to vector<1x256xf32>
    %39 = vector.broadcast %38 : vector<1x256xf32> to vector<64x256xf32>
    %40 = arith.addf %36, %39 : vector<64x256xf32>
    %cst_26 = arith.constant 0.000000e+00 : f32
    %41 = vector.broadcast %cst_26 : f32 to vector<64x256xf32>
    %42 = arith.maximumf %40, %41 : vector<64x256xf32>
    %c1_27 = arith.constant 1 : index
    %c0_28 = arith.constant 0 : index
    %c0_29 = arith.constant 0 : index
    %43 = vector.load %arg5[%c1_27, %c0_28, %c0_29] : memref<4x1x256xf32, #tpu.memory_space<vmem>>, vector<1x1x256xf32>
    %44 = vector.shape_cast %43 : vector<1x1x256xf32> to vector<1x256xf32>
    %45 = vector.broadcast %44 : vector<1x256xf32> to vector<64x256xf32>
    %46 = arith.mulf %42, %45 : vector<64x256xf32>
    %cst_30 = arith.constant dense<0.000000e+00> : vector<64xf32>
    %47 = vector.multi_reduction <add>, %46, %cst_30 [1] : vector<64x256xf32> to vector<64xf32>
    %48 = vector.shape_cast %47 : vector<64xf32> to vector<64x1xf32>
    %c1_i32 = arith.constant 1 : i32
    %49 = vector.broadcast %c1_i32 : i32 to vector<64x4xi32>
    %50 = arith.cmpi eq, %8, %49 : vector<64x4xi32>
    %cst_31 = arith.constant 0.000000e+00 : f32
    %51 = vector.shape_cast %48 : vector<64x1xf32> to vector<64x1xf32>
    %52 = vector.broadcast %51 : vector<64x1xf32> to vector<64x4xf32>
    %53 = vector.broadcast %cst_31 : f32 to vector<64x4xf32>
    %54 = arith.select %50, %52, %53 : vector<64x4xi1>, vector<64x4xf32>
    %55 = arith.addf %32, %54 : vector<64x4xf32>
    %56 = vector.extract_strided_slice %7 {offsets = [0, 512], sizes = [64, 256], strides = [1, 1]} : vector<64x1024xf32> to vector<64x256xf32>
    %c2 = arith.constant 2 : index
    %c0_32 = arith.constant 0 : index
    %c0_33 = arith.constant 0 : index
    %57 = vector.load %arg3[%c2, %c0_32, %c0_33] : memref<4x256x256xf32, #tpu.memory_space<vmem>>, vector<1x256x256xf32>
    %58 = vector.shape_cast %57 : vector<1x256x256xf32> to vector<256x256xf32>
    %cst_34 = arith.constant dense<0.000000e+00> : vector<64x256xf32>
    %59 = tpu.matmul %56, %58, %cst_34 {dimension_numbers = #tpu.dot_dimension_numbers<[1], [0], [0], [1], [0, 0, 1, 1], [], []>} : vector<64x256xf32>, vector<256x256xf32>, vector<64x256xf32> -> vector<64x256xf32>
    %c2_35 = arith.constant 2 : index
    %c0_36 = arith.constant 0 : index
    %c0_37 = arith.constant 0 : index
    %60 = vector.load %arg4[%c2_35, %c0_36, %c0_37] : memref<4x1x256xf32, #tpu.memory_space<vmem>>, vector<1x1x256xf32>
    %61 = vector.shape_cast %60 : vector<1x1x256xf32> to vector<1x256xf32>
    %62 = vector.broadcast %61 : vector<1x256xf32> to vector<64x256xf32>
    %63 = arith.addf %59, %62 : vector<64x256xf32>
    %cst_38 = arith.constant 0.000000e+00 : f32
    %64 = vector.broadcast %cst_38 : f32 to vector<64x256xf32>
    %65 = arith.maximumf %63, %64 : vector<64x256xf32>
    %c2_39 = arith.constant 2 : index
    %c0_40 = arith.constant 0 : index
    %c0_41 = arith.constant 0 : index
    %66 = vector.load %arg5[%c2_39, %c0_40, %c0_41] : memref<4x1x256xf32, #tpu.memory_space<vmem>>, vector<1x1x256xf32>
    %67 = vector.shape_cast %66 : vector<1x1x256xf32> to vector<1x256xf32>
    %68 = vector.broadcast %67 : vector<1x256xf32> to vector<64x256xf32>
    %69 = arith.mulf %65, %68 : vector<64x256xf32>
    %cst_42 = arith.constant dense<0.000000e+00> : vector<64xf32>
    %70 = vector.multi_reduction <add>, %69, %cst_42 [1] : vector<64x256xf32> to vector<64xf32>
    %71 = vector.shape_cast %70 : vector<64xf32> to vector<64x1xf32>
    %c2_i32 = arith.constant 2 : i32
    %72 = vector.broadcast %c2_i32 : i32 to vector<64x4xi32>
    %73 = arith.cmpi eq, %8, %72 : vector<64x4xi32>
    %cst_43 = arith.constant 0.000000e+00 : f32
    %74 = vector.shape_cast %71 : vector<64x1xf32> to vector<64x1xf32>
    %75 = vector.broadcast %74 : vector<64x1xf32> to vector<64x4xf32>
    %76 = vector.broadcast %cst_43 : f32 to vector<64x4xf32>
    %77 = arith.select %73, %75, %76 : vector<64x4xi1>, vector<64x4xf32>
    %78 = arith.addf %55, %77 : vector<64x4xf32>
    %79 = vector.extract_strided_slice %7 {offsets = [0, 768], sizes = [64, 256], strides = [1, 1]} : vector<64x1024xf32> to vector<64x256xf32>
    %c3 = arith.constant 3 : index
    %c0_44 = arith.constant 0 : index
    %c0_45 = arith.constant 0 : index
    %80 = vector.load %arg3[%c3, %c0_44, %c0_45] : memref<4x256x256xf32, #tpu.memory_space<vmem>>, vector<1x256x256xf32>
    %81 = vector.shape_cast %80 : vector<1x256x256xf32> to vector<256x256xf32>
    %cst_46 = arith.constant dense<0.000000e+00> : vector<64x256xf32>
    %82 = tpu.matmul %79, %81, %cst_46 {dimension_numbers = #tpu.dot_dimension_numbers<[1], [0], [0], [1], [0, 0, 1, 1], [], []>} : vector<64x256xf32>, vector<256x256xf32>, vector<64x256xf32> -> vector<64x256xf32>
    %c3_47 = arith.constant 3 : index
    %c0_48 = arith.constant 0 : index
    %c0_49 = arith.constant 0 : index
    %83 = vector.load %arg4[%c3_47, %c0_48, %c0_49] : memref<4x1x256xf32, #tpu.memory_space<vmem>>, vector<1x1x256xf32>
    %84 = vector.shape_cast %83 : vector<1x1x256xf32> to vector<1x256xf32>
    %85 = vector.broadcast %84 : vector<1x256xf32> to vector<64x256xf32>
    %86 = arith.addf %82, %85 : vector<64x256xf32>
    %cst_50 = arith.constant 0.000000e+00 : f32
    %87 = vector.broadcast %cst_50 : f32 to vector<64x256xf32>
    %88 = arith.maximumf %86, %87 : vector<64x256xf32>
    %c3_51 = arith.constant 3 : index
    %c0_52 = arith.constant 0 : index
    %c0_53 = arith.constant 0 : index
    %89 = vector.load %arg5[%c3_51, %c0_52, %c0_53] : memref<4x1x256xf32, #tpu.memory_space<vmem>>, vector<1x1x256xf32>
    %90 = vector.shape_cast %89 : vector<1x1x256xf32> to vector<1x256xf32>
    %91 = vector.broadcast %90 : vector<1x256xf32> to vector<64x256xf32>
    %92 = arith.mulf %88, %91 : vector<64x256xf32>
    %cst_54 = arith.constant dense<0.000000e+00> : vector<64xf32>
    %93 = vector.multi_reduction <add>, %92, %cst_54 [1] : vector<64x256xf32> to vector<64xf32>
    %94 = vector.shape_cast %93 : vector<64xf32> to vector<64x1xf32>
    %c3_i32 = arith.constant 3 : i32
    %95 = vector.broadcast %c3_i32 : i32 to vector<64x4xi32>
    %96 = arith.cmpi eq, %8, %95 : vector<64x4xi32>
    %cst_55 = arith.constant 0.000000e+00 : f32
    %97 = vector.shape_cast %94 : vector<64x1xf32> to vector<64x1xf32>
    %98 = vector.broadcast %97 : vector<64x1xf32> to vector<64x4xf32>
    %99 = vector.broadcast %cst_55 : f32 to vector<64x4xf32>
    %100 = arith.select %96, %98, %99 : vector<64x4xi1>, vector<64x4xf32>
    %101 = arith.addf %78, %100 : vector<64x4xf32>
    %c0_56 = arith.constant 0 : index
    %c0_57 = arith.constant 0 : index
    %102 = vector.load %arg6[%c0_56, %c0_57] : memref<1x4xf32, #tpu.memory_space<vmem>>, vector<1x4xf32>
    %103 = vector.broadcast %102 : vector<1x4xf32> to vector<64x4xf32>
    %104 = arith.addf %101, %103 : vector<64x4xf32>
    %c0_58 = arith.constant 0 : index
    %c0_59 = arith.constant 0 : index
    %105 = vector.load %arg7[%c0_58, %c0_59] : memref<64x4xf32, #tpu.memory_space<vmem>>, vector<64x4xf32>
    tpu.vector_store %arg7[%c0_58, %c0_59], %104 {strides = array<i32>} : memref<64x4xf32, #tpu.memory_space<vmem>>, vector<64x4xf32>,
    return
  }
}

</mosaic_0001>

<llo_original>
// kernel: critic_q_forward.1
$region0: #{critic_q_forward.1}
  #allocation0 [shape = 'u32[]', space=smem, size = 0x4, offset = 0x4, fixed_abs, tag = 'smem constant byte address 0x4 - core index']
  #allocation1 [shape = 'u32[72,128]{1,0:T(1,128)}', space=vmem, size = 0x9000, scoped, tag = 'internal scratch']
  %s0 = inlined_call_operand.vmem [shape: f32[64,24], index: 0, kind: input, shape index: {}]
  %s1 = inlined_call_operand.vmem [shape: f32[24,1024], index: 1, kind: input, shape index: {}]
  %s2 = inlined_call_operand.vmem [shape: f32[1,1024], index: 2, kind: input, shape index: {}]
  %s3 = inlined_call_operand.hbm [shape: f32[4,256,256], index: 3, kind: input, shape index: {}]
  %s4 = inlined_call_operand.vmem [shape: f32[4,1,256], index: 4, kind: input, shape index: {}]
  %s5 = inlined_call_operand.vmem [shape: f32[4,1,256], index: 5, kind: input, shape index: {}]
  %s6 = inlined_call_operand.vmem [shape: f32[1,4], index: 6, kind: input, shape index: {}]
  %s7 = inlined_call_operand.vmem [shape: f32[64,4], index: 7, kind: output, shape index: {}]
  %s8 = sld [smem:[#allocation0]]
  $region42: #{critic_q_forward.1} parent=0
    _
  %s10 = ssub.s32 1, %s8
  %s11 = scalar_select 0, %s10, %s8
  $region1: #{critic_q_forward.1} parent=0
    #allocation2 [shape = 'u8[1048576]{0}', space=vmem, size = 0x100000, scoped, tag = 'input window, operand 3, single buffered']
    #allocation3 [shape = 's32[1]{0}', space=sflag, size = 0x4, scoped, tag = 'scoped memory for critic_q_forward.1']
    %12 = vsyncpa [#allocation3], 0
    // Predicated region
    $region2: #{critic_q_forward.1} parent=1 // pred_check
      _
    $region3: #{critic_q_forward.1} parent=1 // pred_check_branch
      %14 = sbr.rel (0) target = $region5
    $region4: #{critic_q_forward.1} parent=1 // pred_region
      _
    $region5: #{critic_q_forward.1} parent=1 // pred_fallthru
      _
    // Predicated region
    $region6: #{critic_q_forward.1} parent=1 // pred_check
      _
    $region7: #{critic_q_forward.1} parent=1 // pred_check_branch
      %16 = sbr.rel (0) target = $region9
    $region8: #{critic_q_forward.1} parent=1 // pred_region
      _
    $region9: #{critic_q_forward.1} parent=1 // pred_fallthru
      _
    // Predicated region
    $region10: #{critic_q_forward.1} parent=1 // pred_check
      _
    $region11: #{critic_q_forward.1} parent=1 // pred_check_branch
      %18 = sbr.rel (0) target = $region13
    $region12: #{critic_q_forward.1} parent=1 // pred_region
      _
    $region13: #{critic_q_forward.1} parent=1 // pred_fallthru
      _
    // Predicated region
    $region14: #{critic_q_forward.1} parent=1 // pred_check
      _
    $region15: #{critic_q_forward.1} parent=1 // pred_check_branch
      %20 = sbr.rel (0) target = $region17
    $region16: #{critic_q_forward.1} parent=1 // pred_region
      %22 = vsyncadd [#allocation3], 0
      %s23 = sshll.u32 %s3, 4
      %s24 = int_to_ptr.hbm [resolvable:$true] %s23
      %s25 = sshll.u32 [#allocation2], 4
      %s26 = int_to_ptr.vmem [resolvable:$true] %s25
      %31 = dma.hbm_to_vmem [thread:$0]  %s24, 32768, %s26, [#allocation3], 256, 256, 16
    $region17: #{critic_q_forward.1} parent=1 // pred_fallthru
      _
    // Predicated region
    $region18: #{critic_q_forward.1} parent=1 // pred_check
      _
    $region19: #{critic_q_forward.1} parent=1 // pred_check_branch
      %33 = sbr.rel (0) target = $region21
    $region20: #{critic_q_forward.1} parent=1 // pred_region
      _
    $region21: #{critic_q_forward.1} parent=1 // pred_fallthru
      _
    // Predicated region
    $region22: #{critic_q_forward.1} parent=1 // pred_check
      _
    $region23: #{critic_q_forward.1} parent=1 // pred_check_branch
      %35 = sbr.rel (0) target = $region25
    $region24: #{critic_q_forward.1} parent=1 // pred_region
      _
    $region25: #{critic_q_forward.1} parent=1 // pred_fallthru
      _
    // Predicated region
    $region26: #{critic_q_forward.1} parent=1 // pred_check
      _
    $region27: #{critic_q_forward.1} parent=1 // pred_check_branch
      %37 = sbr.rel (0) target = $region29
    $region28: #{critic_q_forward.1} parent=1 // pred_region
      _
    $region29: #{critic_q_forward.1} parent=1 // pred_fallthru
      _
    // Predicated region
    $region30: #{critic_q_forward.1} parent=1 // pred_check
      _
    $region31: #{critic_q_forward.1} parent=1 // pred_check_branch
      %39 = sbr.rel (0) target = $region33
    $region32: #{critic_q_forward.1} parent=1 // pred_region
      %41 = dma.done [#allocation3], 32768
    $region33: #{critic_q_forward.1} parent=1 // pred_fallthru
      _
    %v42 = vld [vmem:[%s0] sm:$0xff]
    %v43 = vld [vmem:[%s0 + $0x8] sm:$0xff]
    %v44 = vld [vmem:[%s0 + $0x10] sm:$0xff]
    %v45 = vld [vmem:[%s0 + $0x18] sm:$0xff]
    %v46 = vld [vmem:[%s0 + $0x20] sm:$0xff]
    %v47 = vld [vmem:[%s0 + $0x28] sm:$0xff]
    %v48 = vld [vmem:[%s0 + $0x30] sm:$0xff]
    %v49 = vld [vmem:[%s0 + $0x38] sm:$0xff]
    %v50 = vld [vmem:[%s1] sm:$0xff]
    %v51 = vld [vmem:[%s1 + $0x8] sm:$0xff]
    %v52 = vld [vmem:[%s1 + $0x10] sm:$0xff]
    %v53 = vld [vmem:[%s1 + $0x18] sm:$0xff]
    %v54 = vld [vmem:[%s1 + $0x20] sm:$0xff]
    %v55 = vld [vmem:[%s1 + $0x28] sm:$0xff]
    %v56 = vld [vmem:[%s1 + $0x30] sm:$0xff]
    %v57 = vld [vmem:[%s1 + $0x38] sm:$0xff]
    %v58 = vld [vmem:[%s1 + $0x40] sm:$0xff]
    %v59 = vld [vmem:[%s1 + $0x48] sm:$0xff]
    %v60 = vld [vmem:[%s1 + $0x50] sm:$0xff]
    %v61 = vld [vmem:[%s1 + $0x58] sm:$0xff]
    %v62 = vld [vmem:[%s1 + $0x60] sm:$0xff]
    %v63 = vld [vmem:[%s1 + $0x68] sm:$0xff]
    %v64 = vld [vmem:[%s1 + $0x70] sm:$0xff]
    %v65 = vld [vmem:[%s1 + $0x78] sm:$0xff]
    %v66 = vld [vmem:[%s1 + $0x80] sm:$0xff]
    %v67 = vld [vmem:[%s1 + $0x88] sm:$0xff]
    %v68 = vld [vmem:[%s1 + $0x90] sm:$0xff]
    %v69 = vld [vmem:[%s1 + $0x98] sm:$0xff]
    %v70 = vld [vmem:[%s1 + $0xa0] sm:$0xff]
    %v71 = vld [vmem:[%s1 + $0xa8] sm:$0xff]
    %v72 = vld [vmem:[%s1 + $0xb0] sm:$0xff]
    %v73 = vld [vmem:[%s1 + $0xb8] sm:$0xff]
    %v74 = vld [vmem:[%s2] sm:$0xff]
    %v76 = vperm.slane %v74, 0
    %v77 = vperm.slane %v74, 1
    %v78 = vperm.slane %v74, 2
    %v79 = vperm.slane %v74, 3
    %v80 = vperm.slane %v74, 4
    %v81 = vperm.slane %v74, 5
    %v82 = vperm.slane %v74, 6
    %v83 = vperm.slane %v74, 7
    %vm92 = vcmask 195584
    %v94 = vsel %vm92, %v42, 0
    %v97 = vsel %vm92, %v43, 0
    %v100 = vsel %vm92, %v44, 0
    %v103 = vsel %vm92, %v45, 0
    %v106 = vsel %vm92, %v46, 0
    %v109 = vsel %vm92, %v47, 0
    %v112 = vsel %vm92, %v48, 0
    %v115 = vsel %vm92, %v49, 0
    %117 = vmatpush.msra.mxu0 0.0
    %118 = vmatpush.msra.mxu0 0.0
    %119 = vmatpush.msra.mxu0 0.0
    %120 = vmatpush.msra.mxu0 0.0
    %121 = vmatpush.msra.mxu0 0.0
    %122 = vmatpush.msra.mxu0 0.0
    %123 = vmatpush.msra.mxu0 0.0
    %124 = vmatpush.msra.mxu0 0.0
    %125 = vmatpush.msra.mxu0 0.0
    %126 = vmatpush.msra.mxu0 0.0
    %127 = vmatpush.msra.mxu0 0.0
    %128 = vmatpush.msra.mxu0 0.0
    %129 = vmatpush.msra.mxu0 0.0
    %130 = vmatpush.msra.mxu0 %v66
    %131 = vmatpush.msra.mxu0 %v58
    %132 = vmatpush.msra.mxu0 %v50
    %133 = vmatmul.f32.gmra.mxu0 %v94
    %v134 = vpop.f32.mrf.mxu0
    %v135 = vadd.f32 %v76, %v134
    %136 = vmatmul.f32.gmra.mxu0 %v97
    %v137 = vpop.f32.mrf.mxu0
    %v138 = vadd.f32 %v76, %v137
    %139 = vmatmul.f32.gmra.mxu0 %v100
    %v140 = vpop.f32.mrf.mxu0
    %v141 = vadd.f32 %v76, %v140
    %142 = vmatmul.f32.gmra.mxu0 %v103
    %v143 = vpop.f32.mrf.mxu0
    %v144 = vadd.f32 %v76, %v143
    %145 = vmatmul.f32.gmra.mxu0 %v106
    %v146 = vpop.f32.mrf.mxu0
    %v147 = vadd.f32 %v76, %v146
    %148 = vmatmul.f32.gmra.mxu0 %v109
    %v149 = vpop.f32.mrf.mxu0
    %v150 = vadd.f32 %v76, %v149
    %151 = vmatmul.f32.gmra.mxu0 %v112
    %v152 = vpop.f32.mrf.mxu0
    %v153 = vadd.f32 %v76, %v152
    %154 = vmatmul.f32.gmra.mxu0 %v115
    %v155 = vpop.f32.mrf.mxu0
    %v156 = vadd.f32 %v76, %v155
    %157 = vdwg.mxu0
    %158 = vmatpush.msra.mxu0 0.0
    %159 = vmatpush.msra.mxu0 0.0
    %160 = vmatpush.msra.mxu0 0.0
    %161 = vmatpush.msra.mxu0 0.0
    %162 = vmatpush.msra.mxu0 0.0
    %163 = vmatpush.msra.mxu0 0.0
    %164 = vmatpush.msra.mxu0 0.0
    %165 = vmatpush.msra.mxu0 0.0
    %166 = vmatpush.msra.mxu0 0.0
    %167 = vmatpush.msra.mxu0 0.0
    %168 = vmatpush.msra.mxu0 0.0
    %169 = vmatpush.msra.mxu0 0.0
    %170 = vmatpush.msra.mxu0 0.0
    %171 = vmatpush.msra.mxu0 %v67
    %172 = vmatpush.msra.mxu0 %v59
    %173 = vmatpush.msra.mxu0 %v51
    %174 = vmatmul.f32.gmra.mxu0 %v94
    %v175 = vpop.f32.mrf.mxu0
    %v176 = vadd.f32 %v77, %v175
    %177 = vmatmul.f32.gmra.mxu0 %v97
    %v178 = vpop.f32.mrf.mxu0
    %v179 = vadd.f32 %v77, %v178
    %180 = vmatmul.f32.gmra.mxu0 %v100
    %v181 = vpop.f32.mrf.mxu0
    %v182 = vadd.f32 %v77, %v181
    %183 = vmatmul.f32.gmra.mxu0 %v103
    %v184 = vpop.f32.mrf.mxu0
    %v185 = vadd.f32 %v77, %v184
    %186 = vmatmul.f32.gmra.mxu0 %v106
    %v187 = vpop.f32.mrf.mxu0
    %v188 = vadd.f32 %v77, %v187
    %189 = vmatmul.f32.gmra.mxu0 %v109
    %v190 = vpop.f32.mrf.mxu0
    %v191 = vadd.f32 %v77, %v190
    %192 = vmatmul.f32.gmra.mxu0 %v112
    %v193 = vpop.f32.mrf.mxu0
    %v194 = vadd.f32 %v77, %v193
    %195 = vmatmul.f32.gmra.mxu0 %v115
    %v196 = vpop.f32.mrf.mxu0
    %v197 = vadd.f32 %v77, %v196
    %198 = vdwg.mxu0
    %199 = vmatpush.msra.mxu0 0.0
    %200 = vmatpush.msra.mxu0 0.0
    %201 = vmatpush.msra.mxu0 0.0
    %202 = vmatpush.msra.mxu0 0.0
    %203 = vmatpush.msra.mxu0 0.0
    %204 = vmatpush.msra.mxu0 0.0
    %205 = vmatpush.msra.mxu0 0.0
    %206 = vmatpush.msra.mxu0 0.0
    %207 = vmatpush.msra.mxu0 0.0
    %208 = vmatpush.msra.mxu0 0.0
    %209 = vmatpush.msra.mxu0 0.0
    %210 = vmatpush.msra.mxu0 0.0
    %211 = vmatpush.msra.mxu0 0.0
    %212 = vmatpush.msra.mxu0 %v68
    %213 = vmatpush.msra.mxu0 %v60
    %214 = vmatpush.msra.mxu0 %v52
    %215 = vmatmul.f32.gmra.mxu0 %v94
    %v216 = vpop.f32.mrf.mxu0
    %v217 = vadd.f32 %v78, %v216
    %218 = vmatmul.f32.gmra.mxu0 %v97
    %v219 = vpop.f32.mrf.mxu0
    %v220 = vadd.f32 %v78, %v219
    %221 = vmatmul.f32.gmra.mxu0 %v100
    %v222 = vpop.f32.mrf.mxu0
    %v223 = vadd.f32 %v78, %v222
    %224 = vmatmul.f32.gmra.mxu0 %v103
    %v225 = vpop.f32.mrf.mxu0
    %v226 = vadd.f32 %v78, %v225
    %227 = vmatmul.f32.gmra.mxu0 %v106
    %v228 = vpop.f32.mrf.mxu0
    %v229 = vadd.f32 %v78, %v228
    %230 = vmatmul.f32.gmra.mxu0 %v109
    %v231 = vpop.f32.mrf.mxu0
    %v232 = vadd.f32 %v78, %v231
    %233 = vmatmul.f32.gmra.mxu0 %v112
    %v234 = vpop.f32.mrf.mxu0
    %v235 = vadd.f32 %v78, %v234
    %236 = vmatmul.f32.gmra.mxu0 %v115
    %v237 = vpop.f32.mrf.mxu0
    %v238 = vadd.f32 %v78, %v237
    %239 = vdwg.mxu0
    %240 = vmatpush.msra.mxu0 0.0
    %241 = vmatpush.msra.mxu0 0.0
    %242 = vmatpush.msra.mxu0 0.0
    %243 = vmatpush.msra.mxu0 0.0
    %244 = vmatpush.msra.mxu0 0.0
    %245 = vmatpush.msra.mxu0 0.0
    %246 = vmatpush.msra.mxu0 0.0
    %247 = vmatpush.msra.mxu0 0.0
    %248 = vmatpush.msra.mxu0 0.0
    %249 = vmatpush.msra.mxu0 0.0
    %250 = vmatpush.msra.mxu0 0.0
    %251 = vmatpush.msra.mxu0 0.0
    %252 = vmatpush.msra.mxu0 0.0
    %253 = vmatpush.msra.mxu0 %v69
    %254 = vmatpush.msra.mxu0 %v61
    %255 = vmatpush.msra.mxu0 %v53
    %256 = vmatmul.f32.gmra.mxu0 %v94
    %v257 = vpop.f32.mrf.mxu0
    %v258 = vadd.f32 %v79, %v257
    %259 = vmatmul.f32.gmra.mxu0 %v97
    %v260 = vpop.f32.mrf.mxu0
    %v261 = vadd.f32 %v79, %v260
    %262 = vmatmul.f32.gmra.mxu0 %v100
    %v263 = vpop.f32.mrf.mxu0
    %v264 = vadd.f32 %v79, %v263
    %265 = vmatmul.f32.gmra.mxu0 %v103
    %v266 = vpop.f32.mrf.mxu0
    %v267 = vadd.f32 %v79, %v266
    %268 = vmatmul.f32.gmra.mxu0 %v106
    %v269 = vpop.f32.mrf.mxu0
    %v270 = vadd.f32 %v79, %v269
    %271 = vmatmul.f32.gmra.mxu0 %v109
    %v272 = vpop.f32.mrf.mxu0
    %v273 = vadd.f32 %v79, %v272
    %274 = vmatmul.f32.gmra.mxu0 %v112
    %v275 = vpop.f32.mrf.mxu0
    %v276 = vadd.f32 %v79, %v275
    %277 = vmatmul.f32.gmra.mxu0 %v115
    %v278 = vpop.f32.mrf.mxu0
    %v279 = vadd.f32 %v79, %v278
    %280 = vdwg.mxu0
    %281 = vmatpush.msra.mxu0 0.0
    %282 = vmatpush.msra.mxu0 0.0
    %283 = vmatpush.msra.mxu0 0.0
    %284 = vmatpush.msra.mxu0 0.0
    %285 = vmatpush.msra.mxu0 0.0
    %286 = vmatpush.msra.mxu0 0.0
    %287 = vmatpush.msra.mxu0 0.0
    %288 = vmatpush.msra.mxu0 0.0
    %289 = vmatpush.msra.mxu0 0.0
    %290 = vmatpush.msra.mxu0 0.0
    %291 = vmatpush.msra.mxu0 0.0
    %292 = vmatpush.msra.mxu0 0.0
    %293 = vmatpush.msra.mxu0 0.0
    %294 = vmatpush.msra.mxu0 %v70
    %295 = vmatpush.msra.mxu0 %v62
    %296 = vmatpush.msra.mxu0 %v54
    %297 = vmatmul.f32.gmra.mxu0 %v94
    %v298 = vpop.f32.mrf.mxu0
    %v299 = vadd.f32 %v80, %v298
    %300 = vmatmul.f32.gmra.mxu0 %v97
    %v301 = vpop.f32.mrf.mxu0
    %v302 = vadd.f32 %v80, %v301
    %303 = vmatmul.f32.gmra.mxu0 %v100
    %v304 = vpop.f32.mrf.mxu0
    %v305 = vadd.f32 %v80, %v304
    %306 = vmatmul.f32.gmra.mxu0 %v103
    %v307 = vpop.f32.mrf.mxu0
    %v308 = vadd.f32 %v80, %v307
    %309 = vmatmul.f32.gmra.mxu0 %v106
    %v310 = vpop.f32.mrf.mxu0
    %v311 = vadd.f32 %v80, %v310
    %312 = vmatmul.f32.gmra.mxu0 %v109
    %v313 = vpop.f32.mrf.mxu0
    %v314 = vadd.f32 %v80, %v313
    %315 = vmatmul.f32.gmra.mxu0 %v112
    %v316 = vpop.f32.mrf.mxu0
    %v317 = vadd.f32 %v80, %v316
    %318 = vmatmul.f32.gmra.mxu0 %v115
    %v319 = vpop.f32.mrf.mxu0
    %v320 = vadd.f32 %v80, %v319
    %321 = vdwg.mxu0
    %322 = vmatpush.msra.mxu0 0.0
    %323 = vmatpush.msra.mxu0 0.0
    %324 = vmatpush.msra.mxu0 0.0
    %325 = vmatpush.msra.mxu0 0.0
    %326 = vmatpush.msra.mxu0 0.0
    %327 = vmatpush.msra.mxu0 0.0
    %328 = vmatpush.msra.mxu0 0.0
    %329 = vmatpush.msra.mxu0 0.0
    %330 = vmatpush.msra.mxu0 0.0
    %331 = vmatpush.msra.mxu0 0.0
    %332 = vmatpush.msra.mxu0 0.0
    %333 = vmatpush.msra.mxu0 0.0
    %334 = vmatpush.msra.mxu0 0.0
    %335 = vmatpush.msra.mxu0 %v71
    %336 = vmatpush.msra.mxu0 %v63
    %337 = vmatpush.msra.mxu0 %v55
    %338 = vmatmul.f32.gmra.mxu0 %v94
    %v339 = vpop.f32.mrf.mxu0
    %v340 = vadd.f32 %v81, %v339
    %341 = vmatmul.f32.gmra.mxu0 %v97
    %v342 = vpop.f32.mrf.mxu0
    %v343 = vadd.f32 %v81, %v342
    %344 = vmatmul.f32.gmra.mxu0 %v100
    %v345 = vpop.f32.mrf.mxu0
    %v346 = vadd.f32 %v81, %v345
    %347 = vmatmul.f32.gmra.mxu0 %v103
    %v348 = vpop.f32.mrf.mxu0
    %v349 = vadd.f32 %v81, %v348
    %350 = vmatmul.f32.gmra.mxu0 %v106
    %v351 = vpop.f32.mrf.mxu0
    %v352 = vadd.f32 %v81, %v351
    %353 = vmatmul.f32.gmra.mxu0 %v109
    %v354 = vpop.f32.mrf.mxu0
    %v355 = vadd.f32 %v81, %v354
    %356 = vmatmul.f32.gmra.mxu0 %v112
    %v357 = vpop.f32.mrf.mxu0
    %v358 = vadd.f32 %v81, %v357
    %359 = vmatmul.f32.gmra.mxu0 %v115
    %v360 = vpop.f32.mrf.mxu0
    %v361 = vadd.f32 %v81, %v360
    %362 = vdwg.mxu0
    %363 = vmatpush.msra.mxu0 0.0
    %364 = vmatpush.msra.mxu0 0.0
    %365 = vmatpush.msra.mxu0 0.0
    %366 = vmatpush.msra.mxu0 0.0
    %367 = vmatpush.msra.mxu0 0.0
    %368 = vmatpush.msra.mxu0 0.0
    %369 = vmatpush.msra.mxu0 0.0
    %370 = vmatpush.msra.mxu0 0.0
    %371 = vmatpush.msra.mxu0 0.0
    %372 = vmatpush.msra.mxu0 0.0
    %373 = vmatpush.msra.mxu0 0.0
    %374 = vmatpush.msra.mxu0 0.0
    %375 = vmatpush.msra.mxu0 0.0
    %376 = vmatpush.msra.mxu0 %v72
    %377 = vmatpush.msra.mxu0 %v64
    %378 = vmatpush.msra.mxu0 %v56
    %379 = vmatmul.f32.gmra.mxu0 %v94
    %v380 = vpop.f32.mrf.mxu0
    %v381 = vadd.f32 %v82, %v380
    %382 = vmatmul.f32.gmra.mxu0 %v97
    %v383 = vpop.f32.mrf.mxu0
    %v384 = vadd.f32 %v82, %v383
    %385 = vmatmul.f32.gmra.mxu0 %v100
    %v386 = vpop.f32.mrf.mxu0
    %v387 = vadd.f32 %v82, %v386
    %388 = vmatmul.f32.gmra.mxu0 %v103
    %v389 = vpop.f32.mrf.mxu0
    %v390 = vadd.f32 %v82, %v389
    %391 = vmatmul.f32.gmra.mxu0 %v106
    %v392 = vpop.f32.mrf.mxu0
    %v393 = vadd.f32 %v82, %v392
    %394 = vmatmul.f32.gmra.mxu0 %v109
    %v395 = vpop.f32.mrf.mxu0
    %v396 = vadd.f32 %v82, %v395
    %397 = vmatmul.f32.gmra.mxu0 %v112
    %v398 = vpop.f32.mrf.mxu0
    %v399 = vadd.f32 %v82, %v398
    %400 = vmatmul.f32.gmra.mxu0 %v115
    %v401 = vpop.f32.mrf.mxu0
    %v402 = vadd.f32 %v82, %v401
    %403 = vdwg.mxu0
    %404 = vmatpush.msra.mxu0 0.0
    %405 = vmatpush.msra.mxu0 0.0
    %406 = vmatpush.msra.mxu0 0.0
    %407 = vmatpush.msra.mxu0 0.0
    %408 = vmatpush.msra.mxu0 0.0
    %409 = vmatpush.msra.mxu0 0.0
    %410 = vmatpush.msra.mxu0 0.0
    %411 = vmatpush.msra.mxu0 0.0
    %412 = vmatpush.msra.mxu0 0.0
    %413 = vmatpush.msra.mxu0 0.0
    %414 = vmatpush.msra.mxu0 0.0
    %415 = vmatpush.msra.mxu0 0.0
    %416 = vmatpush.msra.mxu0 0.0
    %417 = vmatpush.msra.mxu0 %v73
    %418 = vmatpush.msra.mxu0 %v65
    %419 = vmatpush.msra.mxu0 %v57
    %420 = vmatmul.f32.gmra.mxu0 %v94
    %v421 = vpop.f32.mrf.mxu0
    %v422 = vadd.f32 %v83, %v421
    %423 = vmatmul.f32.gmra.mxu0 %v97
    %v424 = vpop.f32.mrf.mxu0
    %v425 = vadd.f32 %v83, %v424
    %426 = vmatmul.f32.gmra.mxu0 %v100
    %v427 = vpop.f32.mrf.mxu0
    %v428 = vadd.f32 %v83, %v427
    %429 = vmatmul.f32.gmra.mxu0 %v103
    %v430 = vpop.f32.mrf.mxu0
    %v431 = vadd.f32 %v83, %v430
    %432 = vmatmul.f32.gmra.mxu0 %v106
    %v433 = vpop.f32.mrf.mxu0
    %v434 = vadd.f32 %v83, %v433
    %435 = vmatmul.f32.gmra.mxu0 %v109
    %v436 = vpop.f32.mrf.mxu0
    %v437 = vadd.f32 %v83, %v436
    %438 = vmatmul.f32.gmra.mxu0 %v112
    %v439 = vpop.f32.mrf.mxu0
    %v440 = vadd.f32 %v83, %v439
    %441 = vmatmul.f32.gmra.mxu0 %v115
    %v442 = vpop.f32.mrf.mxu0
    %v443 = vadd.f32 %v83, %v442
    %444 = vdwg.mxu0
    %v445 = vmax.f32 %v135, 0.0
    %v446 = vmax.f32 %v176, 0.0
    %v447 = vmax.f32 %v217, 0.0
    %v448 = vmax.f32 %v258, 0.0
    %v449 = vmax.f32 %v299, 0.0
    %v450 = vmax.f32 %v340, 0.0
    %v451 = vmax.f32 %v381, 0.0
    %v452 = vmax.f32 %v422, 0.0
    %v453 = vmax.f32 %v138, 0.0
    %v454 = vmax.f32 %v179, 0.0
    %v455 = vmax.f32 %v220, 0.0
    %v456 = vmax.f32 %v261, 0.0
    %v457 = vmax.f32 %v302, 0.0
    %v458 = vmax.f32 %v343, 0.0
    %v459 = vmax.f32 %v384, 0.0
    %v460 = vmax.f32 %v425, 0.0
    %v461 = vmax.f32 %v141, 0.0
    %v462 = vmax.f32 %v182, 0.0
    %v463 = vmax.f32 %v223, 0.0
    %v464 = vmax.f32 %v264, 0.0
    %v465 = vmax.f32 %v305, 0.0
    %v466 = vmax.f32 %v346, 0.0
    %v467 = vmax.f32 %v387, 0.0
    %v468 = vmax.f32 %v428, 0.0
    %v469 = vmax.f32 %v144, 0.0
    %v470 = vmax.f32 %v185, 0.0
    %v471 = vmax.f32 %v226, 0.0
    %v472 = vmax.f32 %v267, 0.0
    %v473 = vmax.f32 %v308, 0.0
    %v474 = vmax.f32 %v349, 0.0
    %v475 = vmax.f32 %v390, 0.0
    %v476 = vmax.f32 %v431, 0.0
    %v477 = vmax.f32 %v147, 0.0
    %v478 = vmax.f32 %v188, 0.0
    %v479 = vmax.f32 %v229, 0.0
    %v480 = vmax.f32 %v270, 0.0
    %v481 = vmax.f32 %v311, 0.0
    %v482 = vmax.f32 %v352, 0.0
    %v483 = vmax.f32 %v393, 0.0
    %v484 = vmax.f32 %v434, 0.0
    %v485 = vmax.f32 %v150, 0.0
    %v486 = vmax.f32 %v191, 0.0
    %v487 = vmax.f32 %v232, 0.0
    %v488 = vmax.f32 %v273, 0.0
    %v489 = vmax.f32 %v314, 0.0
    %v490 = vmax.f32 %v355, 0.0
    %v491 = vmax.f32 %v396, 0.0
    %v492 = vmax.f32 %v437, 0.0
    %v493 = vmax.f32 %v153, 0.0
    %v494 = vmax.f32 %v194, 0.0
    %v495 = vmax.f32 %v235, 0.0
    %v496 = vmax.f32 %v276, 0.0
    %v497 = vmax.f32 %v317, 0.0
    %v498 = vmax.f32 %v358, 0.0
    %v499 = vmax.f32 %v399, 0.0
    %v500 = vmax.f32 %v440, 0.0
    %v501 = vmax.f32 %v156, 0.0
    %v502 = vmax.f32 %v197, 0.0
    %v503 = vmax.f32 %v238, 0.0
    %v504 = vmax.f32 %v279, 0.0
    %v505 = vmax.f32 %v320, 0.0
    %v506 = vmax.f32 %v361, 0.0
    %v507 = vmax.f32 %v402, 0.0
    %v508 = vmax.f32 %v443, 0.0
    %v509 = vlaneseq
    %v510 = vand.u32 %v509, 127
    %v511 = vld [vmem:[#allocation2] sm:$0xff]
    %v512 = vld [vmem:[#allocation2 + $0x8] sm:$0xff]
    %v513 = vld [vmem:[#allocation2 + $0x10] sm:$0xff]
    %v514 = vld [vmem:[#allocation2 + $0x18] sm:$0xff]
    %v515 = vld [vmem:[#allocation2 + $0x20] sm:$0xff]
    %v516 = vld [vmem:[#allocation2 + $0x28] sm:$0xff]
    %v517 = vld [vmem:[#allocation2 + $0x30] sm:$0xff]
    %v518 = vld [vmem:[#allocation2 + $0x38] sm:$0xff]
    %v519 = vld [vmem:[#allocation2 + $0x40] sm:$0xff]
    %v520 = vld [vmem:[#allocation2 + $0x48] sm:$0xff]
    %v521 = vld [vmem:[#allocation2 + $0x50] sm:$0xff]
    %v522 = vld [vmem:[#allocation2 + $0x58] sm:$0xff]
    %v523 = vld [vmem:[#allocation2 + $0x60] sm:$0xff]
    %v524 = vld [vmem:[#allocation2 + $0x68] sm:$0xff]
    %v525 = vld [vmem:[#allocation2 + $0x70] sm:$0xff]
    %v526 = vld [vmem:[#allocation2 + $0x78] sm:$0xff]
    %v527 = vld [vmem:[#allocation2 + $0x80] sm:$0xff]
    %v528 = vld [vmem:[#allocation2 + $0x88] sm:$0xff]
    %v529 = vld [vmem:[#allocation2 + $0x90] sm:$0xff]
    %v530 = vld [vmem:[#allocation2 + $0x98] sm:$0xff]
    %v531 = vld [vmem:[#allocation2 + $0xa0] sm:$0xff]
    %v532 = vld [vmem:[#allocation2 + $0xa8] sm:$0xff]
    %v533 = vld [vmem:[#allocation2 + $0xb0] sm:$0xff]
    %v534 = vld [vmem:[#allocation2 + $0xb8] sm:$0xff]
    %v535 = vld [vmem:[#allocation2 + $0xc0] sm:$0xff]
    %v536 = vld [vmem:[#allocation2 + $0xc8] sm:$0xff]
    %v537 = vld [vmem:[#allocation2 + $0xd0] sm:$0xff]
    %v538 = vld [vmem:[#allocation2 + $0xd8] sm:$0xff]
    %v539 = vld [vmem:[#allocation2 + $0xe0] sm:$0xff]
    %v540 = vld [vmem:[#allocation2 + $0xe8] sm:$0xff]
    %v541 = vld [vmem:[#allocation2 + $0xf0] sm:$0xff]
    %v542 = vld [vmem:[#allocation2 + $0xf8] sm:$0xff]
    %v543 = vld [vmem:[#allocation2 + $0x100] sm:$0xff]
    %v544 = vld [vmem:[#allocation2 + $0x108] sm:$0xff]
    %v545 = vld [vmem:[#allocation2 + $0x110] sm:$0xff]
    %v546 = vld [vmem:[#allocation2 + $0x118] sm:$0xff]
    %v547 = vld [vmem:[#allocation2 + $0x120] sm:$0xff]
    %v548 = vld [vmem:[#allocation2 + $0x128] sm:$0xff]
    %v549 = vld [vmem:[#allocation2 + $0x130] sm:$0xff]
    %v550 = vld [vmem:[#allocation2 + $0x138] sm:$0xff]
    %v551 = vld [vmem:[#allocation2 + $0x140] sm:$0xff]
    %v552 = vld [vmem:[#allocation2 + $0x148] sm:$0xff]
    %v553 = vld [vmem:[#allocation2 + $0x150] sm:$0xff]
    %v554 = vld [vmem:[#allocation2 + $0x158] sm:$0xff]
    %v555 = vld [vmem:[#allocation2 + $0x160] sm:$0xff]
    %v556 = vld [vmem:[#allocation2 + $0x168] sm:$0xff]
    %v557 = vld [vmem:[#allocation2 + $0x170] sm:$0xff]
    %v558 = vld [vmem:[#allocation2 + $0x178] sm:$0xff]
    %v559 = vld [vmem:[#allocation2 + $0x180] sm:$0xff]
    %v560 = vld [vmem:[#allocation2 + $0x188] sm:$0xff]
    %v561 = vld [vmem:[#allocation2 + $0x190] sm:$0xff]
    %v562 = vld [vmem:[#allocation2 + $0x198] sm:$0xff]
    %v563 = vld [vmem:[#allocation2 + $0x1a0] sm:$0xff]
    %v564 = vld [vmem:[#allocation2 + $0x1a8] sm:$0xff]
    %v565 = vld [vmem:[#allocation2 + $0x1b0] sm:$0xff]
    %v566 = vld [vmem:[#allocation2 + $0x1b8] sm:$0xff]
    %v567 = vld [vmem:[#allocation2 + $0x1c0] sm:$0xff]
    %v568 = vld [vmem:[#allocation2 + $0x1c8] sm:$0xff]
    %v569 = vld [vmem:[#allocation2 + $0x1d0] sm:$0xff]
    %v570 = vld [vmem:[#allocation2 + $0x1d8] sm:$0xff]
    %v571 = vld [vmem:[#allocation2 + $0x1e0] sm:$0xff]
    %v572 = vld [vmem:[#allocation2 + $0x1e8] sm:$0xff]
    %v573 = vld [vmem:[#allocation2 + $0x1f0] sm:$0xff]
    %v574 = vld [vmem:[#allocation2 + $0x1f8] sm:$0xff]
    %v575 = vld [vmem:[%s4] sm:$0x3]
    %v577 = vperm.slane %v575, 0
    %v578 = vperm.slane %v575, 1
    %581 = vmatpush.msra.mxu0 %v541
    %582 = vmatpush.msra.mxu0 %v539
    %583 = vmatpush.msra.mxu0 %v537
    %584 = vmatpush.msra.mxu0 %v535
    %585 = vmatpush.msra.mxu0 %v533
    %586 = vmatpush.msra.mxu0 %v531
    %587 = vmatpush.msra.mxu0 %v529
    %588 = vmatpush.msra.mxu0 %v527
    %589 = vmatpush.msra.mxu0 %v525
    %590 = vmatpush.msra.mxu0 %v523
    %591 = vmatpush.msra.mxu0 %v521
    %592 = vmatpush.msra.mxu0 %v519
    %593 = vmatpush.msra.mxu0 %v517
    %594 = vmatpush.msra.mxu0 %v515
    %595 = vmatpush.msra.mxu0 %v513
    %596 = vmatpush.msra.mxu0 %v511
    %597 = vmatmul.f32.gmra.mxu0 %v445
    %v598 = vpop.f32.mrf.mxu0
    %v599 = vadd.f32 %v577, %v598
    %600 = vmatmul.f32.gmra.mxu0 %v453
    %v601 = vpop.f32.mrf.mxu0
    %v602 = vadd.f32 %v577, %v601
    %603 = vmatmul.f32.gmra.mxu0 %v461
    %v604 = vpop.f32.mrf.mxu0
    %v605 = vadd.f32 %v577, %v604
    %606 = vmatmul.f32.gmra.mxu0 %v469
    %v607 = vpop.f32.mrf.mxu0
    %v608 = vadd.f32 %v577, %v607
    %609 = vmatmul.f32.gmra.mxu0 %v477
    %v610 = vpop.f32.mrf.mxu0
    %v611 = vadd.f32 %v577, %v610
    %612 = vmatmul.f32.gmra.mxu0 %v485
    %v613 = vpop.f32.mrf.mxu0
    %v614 = vadd.f32 %v577, %v613
    %615 = vmatmul.f32.gmra.mxu0 %v493
    %v616 = vpop.f32.mrf.mxu0
    %v617 = vadd.f32 %v577, %v616
    %618 = vmatmul.f32.gmra.mxu0 %v501
    %v619 = vpop.f32.mrf.mxu0
    %v620 = vadd.f32 %v577, %v619
    %621 = vdwg.mxu0
    %622 = vmatpush.msra.mxu0 %v573
    %623 = vmatpush.msra.mxu0 %v571
    %624 = vmatpush.msra.mxu0 %v569
    %625 = vmatpush.msra.mxu0 %v567
    %626 = vmatpush.msra.mxu0 %v565
    %627 = vmatpush.msra.mxu0 %v563
    %628 = vmatpush.msra.mxu0 %v561
    %629 = vmatpush.msra.mxu0 %v559
    %630 = vmatpush.msra.mxu0 %v557
    %631 = vmatpush.msra.mxu0 %v555
    %632 = vmatpush.msra.mxu0 %v553
    %633 = vmatpush.msra.mxu0 %v551
    %634 = vmatpush.msra.mxu0 %v549
    %635 = vmatpush.msra.mxu0 %v547
    %636 = vmatpush.msra.mxu0 %v545
    %637 = vmatpush.msra.mxu0 %v543
    %638 = vmatmul.f32.gmra.mxu0 %v446
    %v639 = vpop.f32.mrf.mxu0
    %v640 = vadd.f32 %v599, %v639
    %641 = vmatmul.f32.gmra.mxu0 %v454
    %v642 = vpop.f32.mrf.mxu0
    %v643 = vadd.f32 %v602, %v642
    %644 = vmatmul.f32.gmra.mxu0 %v462
    %v645 = vpop.f32.mrf.mxu0
    %v646 = vadd.f32 %v605, %v645
    %647 = vmatmul.f32.gmra.mxu0 %v470
    %v648 = vpop.f32.mrf.mxu0
    %v649 = vadd.f32 %v608, %v648
    %650 = vmatmul.f32.gmra.mxu0 %v478
    %v651 = vpop.f32.mrf.mxu0
    %v652 = vadd.f32 %v611, %v651
    %653 = vmatmul.f32.gmra.mxu0 %v486
    %v654 = vpop.f32.mrf.mxu0
    %v655 = vadd.f32 %v614, %v654
    %656 = vmatmul.f32.gmra.mxu0 %v494
    %v657 = vpop.f32.mrf.mxu0
    %v658 = vadd.f32 %v617, %v657
    %659 = vmatmul.f32.gmra.mxu0 %v502
    %v660 = vpop.f32.mrf.mxu0
    %v661 = vadd.f32 %v620, %v660
    %662 = vdwg.mxu0
    %663 = vmatpush.msra.mxu0 %v542
    %664 = vmatpush.msra.mxu0 %v540
    %665 = vmatpush.msra.mxu0 %v538
    %666 = vmatpush.msra.mxu0 %v536
    %667 = vmatpush.msra.mxu0 %v534
    %668 = vmatpush.msra.mxu0 %v532
    %669 = vmatpush.msra.mxu0 %v530
    %670 = vmatpush.msra.mxu0 %v528
    %671 = vmatpush.msra.mxu0 %v526
    %672 = vmatpush.msra.mxu0 %v524
    %673 = vmatpush.msra.mxu0 %v522
    %674 = vmatpush.msra.mxu0 %v520
    %675 = vmatpush.msra.mxu0 %v518
    %676 = vmatpush.msra.mxu0 %v516
    %677 = vmatpush.msra.mxu0 %v514
    %678 = vmatpush.msra.mxu0 %v512
    %679 = vmatmul.f32.gmra.mxu0 %v445
    %v680 = vpop.f32.mrf.mxu0
    %v681 = vadd.f32 %v578, %v680
    %682 = vmatmul.f32.gmra.mxu0 %v453
    %v683 = vpop.f32.mrf.mxu0
    %v684 = vadd.f32 %v578, %v683
    %685 = vmatmul.f32.gmra.mxu0 %v461
    %v686 = vpop.f32.mrf.mxu0
    %v687 = vadd.f32 %v578, %v686
    %688 = vmatmul.f32.gmra.mxu0 %v469
    %v689 = vpop.f32.mrf.mxu0
    %v690 = vadd.f32 %v578, %v689
    %691 = vmatmul.f32.gmra.mxu0 %v477
    %v692 = vpop.f32.mrf.mxu0
    %v693 = vadd.f32 %v578, %v692
    %694 = vmatmul.f32.gmra.mxu0 %v485
    %v695 = vpop.f32.mrf.mxu0
    %v696 = vadd.f32 %v578, %v695
    %697 = vmatmul.f32.gmra.mxu0 %v493
    %v698 = vpop.f32.mrf.mxu0
    %v699 = vadd.f32 %v578, %v698
    %700 = vmatmul.f32.gmra.mxu0 %v501
    %v701 = vpop.f32.mrf.mxu0
    %v702 = vadd.f32 %v578, %v701
    %703 = vdwg.mxu0
    %704 = vmatpush.msra.mxu0 %v574
    %705 = vmatpush.msra.mxu0 %v572
    %706 = vmatpush.msra.mxu0 %v570
    %707 = vmatpush.msra.mxu0 %v568
    %708 = vmatpush.msra.mxu0 %v566
    %709 = vmatpush.msra.mxu0 %v564
    %710 = vmatpush.msra.mxu0 %v562
    %711 = vmatpush.msra.mxu0 %v560
    %712 = vmatpush.msra.mxu0 %v558
    %713 = vmatpush.msra.mxu0 %v556
    %714 = vmatpush.msra.mxu0 %v554
    %715 = vmatpush.msra.mxu0 %v552
    %716 = vmatpush.msra.mxu0 %v550
    %717 = vmatpush.msra.mxu0 %v548
    %718 = vmatpush.msra.mxu0 %v546
    %719 = vmatpush.msra.mxu0 %v544
    %720 = vmatmul.f32.gmra.mxu0 %v446
    %v721 = vpop.f32.mrf.mxu0
    %v722 = vadd.f32 %v681, %v721
    %723 = vmatmul.f32.gmra.mxu0 %v454
    %v724 = vpop.f32.mrf.mxu0
    %v725 = vadd.f32 %v684, %v724
    %726 = vmatmul.f32.gmra.mxu0 %v462
    %v727 = vpop.f32.mrf.mxu0
    %v728 = vadd.f32 %v687, %v727
    %729 = vmatmul.f32.gmra.mxu0 %v470
    %v730 = vpop.f32.mrf.mxu0
    %v731 = vadd.f32 %v690, %v730
    %732 = vmatmul.f32.gmra.mxu0 %v478
    %v733 = vpop.f32.mrf.mxu0
    %v734 = vadd.f32 %v693, %v733
    %735 = vmatmul.f32.gmra.mxu0 %v486
    %v736 = vpop.f32.mrf.mxu0
    %v737 = vadd.f32 %v696, %v736
    %738 = vmatmul.f32.gmra.mxu0 %v494
    %v739 = vpop.f32.mrf.mxu0
    %v740 = vadd.f32 %v699, %v739
    %741 = vmatmul.f32.gmra.mxu0 %v502
    %v742 = vpop.f32.mrf.mxu0
    %v743 = vadd.f32 %v702, %v742
    %744 = vdwg.mxu0
    %v745 = vmax.f32 %v640, 0.0
    %v746 = vmax.f32 %v722, 0.0
    %v747 = vmax.f32 %v643, 0.0
    %v748 = vmax.f32 %v725, 0.0
    %v749 = vmax.f32 %v646, 0.0
    %v750 = vmax.f32 %v728, 0.0
    %v751 = vmax.f32 %v649, 0.0
    %v752 = vmax.f32 %v731, 0.0
    %v753 = vmax.f32 %v652, 0.0
    %v754 = vmax.f32 %v734, 0.0
    %v755 = vmax.f32 %v655, 0.0
    %v756 = vmax.f32 %v737, 0.0
    %v757 = vmax.f32 %v658, 0.0
    %v758 = vmax.f32 %v740, 0.0
    %v759 = vmax.f32 %v661, 0.0
    %v760 = vmax.f32 %v743, 0.0
    %v761 = vld [vmem:[%s5] sm:$0x3]
    %v763 = vperm.slane %v761, 0
    %v764 = vperm.slane %v761, 1
    %v767 = vmul.f32 %v745, %v763
    %v768 = vmul.f32 %v746, %v764
    %v769 = vmul.f32 %v747, %v763
    %v770 = vmul.f32 %v748, %v764
    %v771 = vmul.f32 %v749, %v763
    %v772 = vmul.f32 %v750, %v764
    %v773 = vmul.f32 %v751, %v763
    %v774 = vmul.f32 %v752, %v764
    %v775 = vmul.f32 %v753, %v763
    %v776 = vmul.f32 %v754, %v764
    %v777 = vmul.f32 %v755, %v763
    %v778 = vmul.f32 %v756, %v764
    %v779 = vmul.f32 %v757, %v763
    %v780 = vmul.f32 %v758, %v764
    %v781 = vmul.f32 %v759, %v763
    %v782 = vmul.f32 %v760, %v764
    %v783 = vadd.f32 %v767, %v768
    %784 = vadd.xlane.f32.xlu0 %v783
    %v785 = vpop.xlane.xlu0 %784
    %v786 = vadd.f32 %v769, %v770
    %787 = vadd.xlane.f32.xlu0 %v786
    %v788 = vpop.xlane.xlu0 %787
    %v789 = vadd.f32 %v771, %v772
    %790 = vadd.xlane.f32.xlu0 %v789
    %v791 = vpop.xlane.xlu0 %790
    %v792 = vadd.f32 %v773, %v774
    %793 = vadd.xlane.f32.xlu0 %v792
    %v794 = vpop.xlane.xlu0 %793
    %v795 = vadd.f32 %v775, %v776
    %796 = vadd.xlane.f32.xlu0 %v795
    %v797 = vpop.xlane.xlu0 %796
    %v798 = vadd.f32 %v777, %v778
    %799 = vadd.xlane.f32.xlu0 %v798
    %v800 = vpop.xlane.xlu0 %799
    %v801 = vadd.f32 %v779, %v780
    %802 = vadd.xlane.f32.xlu0 %v801
    %v803 = vpop.xlane.xlu0 %802
    %v804 = vadd.f32 %v781, %v782
    %805 = vadd.xlane.f32.xlu0 %v804
    %v806 = vpop.xlane.xlu0 %805
    %vm807 = vcmp.eq.s32.totalorder %v510, 0
    %v808 = vsel %vm807, %v785, 0.0
    %v809 = vsel %vm807, %v788, 0.0
    %v810 = vsel %vm807, %v791, 0.0
    %v811 = vsel %vm807, %v794, 0.0
    %v812 = vsel %vm807, %v797, 0.0
    %v813 = vsel %vm807, %v800, 0.0
    %v814 = vsel %vm807, %v803, 0.0
    %v815 = vsel %vm807, %v806, 0.0
    %v816 = vadd.f32 %v808, 0.0
    %v817 = vadd.f32 %v809, 0.0
    %v818 = vadd.f32 %v810, 0.0
    %v819 = vadd.f32 %v811, 0.0
    %v820 = vadd.f32 %v812, 0.0
    %v821 = vadd.f32 %v813, 0.0
    %v822 = vadd.f32 %v814, 0.0
    %v823 = vadd.f32 %v815, 0.0
    %s824 = scalar_lea.vmem [#allocation2], 512
    %v825 = vld [vmem:[%s824] sm:$0xff]
    %v826 = vld [vmem:[%s824 + $0x8] sm:$0xff]
    %v827 = vld [vmem:[%s824 + $0x10] sm:$0xff]
    %v828 = vld [vmem:[%s824 + $0x18] sm:$0xff]
    %v829 = vld [vmem:[%s824 + $0x20] sm:$0xff]
    %v830 = vld [vmem:[%s824 + $0x28] sm:$0xff]
    %v831 = vld [vmem:[%s824 + $0x30] sm:$0xff]
    %v832 = vld [vmem:[%s824 + $0x38] sm:$0xff]
    %v833 = vld [vmem:[%s824 + $0x40] sm:$0xff]
    %v834 = vld [vmem:[%s824 + $0x48] sm:$0xff]
    %v835 = vld [vmem:[%s824 + $0x50] sm:$0xff]
    %v836 = vld [vmem:[%s824 + $0x58] sm:$0xff]
    %v837 = vld [vmem:[%s824 + $0x60] sm:$0xff]
    %v838 = vld [vmem:[%s824 + $0x68] sm:$0xff]
    %v839 = vld [vmem:[%s824 + $0x70] sm:$0xff]
    %v840 = vld [vmem:[%s824 + $0x78] sm:$0xff]
    %v841 = vld [vmem:[%s824 + $0x80] sm:$0xff]
    %v842 = vld [vmem:[%s824 + $0x88] sm:$0xff]
    %v843 = vld [vmem:[%s824 + $0x90] sm:$0xff]
    %v844 = vld [vmem:[%s824 + $0x98] sm:$0xff]
    %v845 = vld [vmem:[%s824 + $0xa0] sm:$0xff]
    %v846 = vld [vmem:[%s824 + $0xa8] sm:$0xff]
    %v847 = vld [vmem:[%s824 + $0xb0] sm:$0xff]
    %v848 = vld [vmem:[%s824 + $0xb8] sm:$0xff]
    %v849 = vld [vmem:[%s824 + $0xc0] sm:$0xff]
    %v850 = vld [vmem:[%s824 + $0xc8] sm:$0xff]
    %v851 = vld [vmem:[%s824 + $0xd0] sm:$0xff]
    %v852 = vld [vmem:[%s824 + $0xd8] sm:$0xff]
    %v853 = vld [vmem:[%s824 + $0xe0] sm:$0xff]
    %v854 = vld [vmem:[%s824 + $0xe8] sm:$0xff]
    %v855 = vld [vmem:[%s824 + $0xf0] sm:$0xff]
    %v856 = vld [vmem:[%s824 + $0xf8] sm:$0xff]
    %v857 = vld [vmem:[%s824 + $0x100] sm:$0xff]
    %v858 = vld [vmem:[%s824 + $0x108] sm:$0xff]
    %v859 = vld [vmem:[%s824 + $0x110] sm:$0xff]
    %v860 = vld [vmem:[%s824 + $0x118] sm:$0xff]
    %v861 = vld [vmem:[%s824 + $0x120] sm:$0xff]
    %v862 = vld [vmem:[%s824 + $0x128] sm:$0xff]
    %v863 = vld [vmem:[%s824 + $0x130] sm:$0xff]
    %v864 = vld [vmem:[%s824 + $0x138] sm:$0xff]
    %v865 = vld [vmem:[%s824 + $0x140] sm:$0xff]
    %v866 = vld [vmem:[%s824 + $0x148] sm:$0xff]
    %v867 = vld [vmem:[%s824 + $0x150] sm:$0xff]
    %v868 = vld [vmem:[%s824 + $0x158] sm:$0xff]
    %v869 = vld [vmem:[%s824 + $0x160] sm:$0xff]
    %v870 = vld [vmem:[%s824 + $0x168] sm:$0xff]
    %v871 = vld [vmem:[%s824 + $0x170] sm:$0xff]
    %v872 = vld [vmem:[%s824 + $0x178] sm:$0xff]
    %v873 = vld [vmem:[%s824 + $0x180] sm:$0xff]
    %v874 = vld [vmem:[%s824 + $0x188] sm:$0xff]
    %v875 = vld [vmem:[%s824 + $0x190] sm:$0xff]
    %v876 = vld [vmem:[%s824 + $0x198] sm:$0xff]
    %v877 = vld [vmem:[%s824 + $0x1a0] sm:$0xff]
    %v878 = vld [vmem:[%s824 + $0x1a8] sm:$0xff]
    %v879 = vld [vmem:[%s824 + $0x1b0] sm:$0xff]
    %v880 = vld [vmem:[%s824 + $0x1b8] sm:$0xff]
    %v881 = vld [vmem:[%s824 + $0x1c0] sm:$0xff]
    %v882 = vld [vmem:[%s824 + $0x1c8] sm:$0xff]
    %v883 = vld [vmem:[%s824 + $0x1d0] sm:$0xff]
    %v884 = vld [vmem:[%s824 + $0x1d8] sm:$0xff]
    %v885 = vld [vmem:[%s824 + $0x1e0] sm:$0xff]
    %v886 = vld [vmem:[%s824 + $0x1e8] sm:$0xff]
    %v887 = vld [vmem:[%s824 + $0x1f0] sm:$0xff]
    %v888 = vld [vmem:[%s824 + $0x1f8] sm:$0xff]
    %s889 = scalar_lea.vmem %s4, 2
    %v890 = vld [vmem:[%s889] sm:$0x3]
    %v892 = vperm.slane %v890, 0
    %v893 = vperm.slane %v890, 1
    %896 = vmatpush.msra.mxu0 %v855
    %897 = vmatpush.msra.mxu0 %v853
    %898 = vmatpush.msra.mxu0 %v851
    %899 = vmatpush.msra.mxu0 %v849
    %900 = vmatpush.msra.mxu0 %v847
    %901 = vmatpush.msra.mxu0 %v845
    %902 = vmatpush.msra.mxu0 %v843
    %903 = vmatpush.msra.mxu0 %v841
    %904 = vmatpush.msra.mxu0 %v839
    %905 = vmatpush.msra.mxu0 %v837
    %906 = vmatpush.msra.mxu0 %v835
    %907 = vmatpush.msra.mxu0 %v833
    %908 = vmatpush.msra.mxu0 %v831
    %909 = vmatpush.msra.mxu0 %v829
    %910 = vmatpush.msra.mxu0 %v827
    %911 = vmatpush.msra.mxu0 %v825
    %912 = vmatmul.f32.gmra.mxu0 %v447
    %v913 = vpop.f32.mrf.mxu0
    %v914 = vadd.f32 %v892, %v913
    %915 = vmatmul.f32.gmra.mxu0 %v455
    %v916 = vpop.f32.mrf.mxu0
    %v917 = vadd.f32 %v892, %v916
    %918 = vmatmul.f32.gmra.mxu0 %v463
    %v919 = vpop.f32.mrf.mxu0
    %v920 = vadd.f32 %v892, %v919
    %921 = vmatmul.f32.gmra.mxu0 %v471
    %v922 = vpop.f32.mrf.mxu0
    %v923 = vadd.f32 %v892, %v922
    %924 = vmatmul.f32.gmra.mxu0 %v479
    %v925 = vpop.f32.mrf.mxu0
    %v926 = vadd.f32 %v892, %v925
    %927 = vmatmul.f32.gmra.mxu0 %v487
    %v928 = vpop.f32.mrf.mxu0
    %v929 = vadd.f32 %v892, %v928
    %930 = vmatmul.f32.gmra.mxu0 %v495
    %v931 = vpop.f32.mrf.mxu0
    %v932 = vadd.f32 %v892, %v931
    %933 = vmatmul.f32.gmra.mxu0 %v503
    %v934 = vpop.f32.mrf.mxu0
    %v935 = vadd.f32 %v892, %v934
    %936 = vdwg.mxu0
    %937 = vmatpush.msra.mxu0 %v887
    %938 = vmatpush.msra.mxu0 %v885
    %939 = vmatpush.msra.mxu0 %v883
    %940 = vmatpush.msra.mxu0 %v881
    %941 = vmatpush.msra.mxu0 %v879
    %942 = vmatpush.msra.mxu0 %v877
    %943 = vmatpush.msra.mxu0 %v875
    %944 = vmatpush.msra.mxu0 %v873
    %945 = vmatpush.msra.mxu0 %v871
    %946 = vmatpush.msra.mxu0 %v869
    %947 = vmatpush.msra.mxu0 %v867
    %948 = vmatpush.msra.mxu0 %v865
    %949 = vmatpush.msra.mxu0 %v863
    %950 = vmatpush.msra.mxu0 %v861
    %951 = vmatpush.msra.mxu0 %v859
    %952 = vmatpush.msra.mxu0 %v857
    %953 = vmatmul.f32.gmra.mxu0 %v448
    %v954 = vpop.f32.mrf.mxu0
    %v955 = vadd.f32 %v914, %v954
    %956 = vmatmul.f32.gmra.mxu0 %v456
    %v957 = vpop.f32.mrf.mxu0
    %v958 = vadd.f32 %v917, %v957
    %959 = vmatmul.f32.gmra.mxu0 %v464
    %v960 = vpop.f32.mrf.mxu0
    %v961 = vadd.f32 %v920, %v960
    %962 = vmatmul.f32.gmra.mxu0 %v472
    %v963 = vpop.f32.mrf.mxu0
    %v964 = vadd.f32 %v923, %v963
    %965 = vmatmul.f32.gmra.mxu0 %v480
    %v966 = vpop.f32.mrf.mxu0
    %v967 = vadd.f32 %v926, %v966
    %968 = vmatmul.f32.gmra.mxu0 %v488
    %v969 = vpop.f32.mrf.mxu0
    %v970 = vadd.f32 %v929, %v969
    %971 = vmatmul.f32.gmra.mxu0 %v496
    %v972 = vpop.f32.mrf.mxu0
    %v973 = vadd.f32 %v932, %v972
    %974 = vmatmul.f32.gmra.mxu0 %v504
    %v975 = vpop.f32.mrf.mxu0
    %v976 = vadd.f32 %v935, %v975
    %977 = vdwg.mxu0
    %978 = vmatpush.msra.mxu0 %v856
    %979 = vmatpush.msra.mxu0 %v854
    %980 = vmatpush.msra.mxu0 %v852
    %981 = vmatpush.msra.mxu0 %v850
    %982 = vmatpush.msra.mxu0 %v848
    %983 = vmatpush.msra.mxu0 %v846
    %984 = vmatpush.msra.mxu0 %v844
    %985 = vmatpush.msra.mxu0 %v842
    %986 = vmatpush.msra.mxu0 %v840
    %987 = vmatpush.msra.mxu0 %v838
    %988 = vmatpush.msra.mxu0 %v836
    %989 = vmatpush.msra.mxu0 %v834
    %990 = vmatpush.msra.mxu0 %v832
    %991 = vmatpush.msra.mxu0 %v830
    %992 = vmatpush.msra.mxu0 %v828
    %993 = vmatpush.msra.mxu0 %v826
    %994 = vmatmul.f32.gmra.mxu0 %v447
    %v995 = vpop.f32.mrf.mxu0
    %v996 = vadd.f32 %v893, %v995
    %997 = vmatmul.f32.gmra.mxu0 %v455
    %v998 = vpop.f32.mrf.mxu0
    %v999 = vadd.f32 %v893, %v998
    %1000 = vmatmul.f32.gmra.mxu0 %v463
    %v1001 = vpop.f32.mrf.mxu0
    %v1002 = vadd.f32 %v893, %v1001
    %1003 = vmatmul.f32.gmra.mxu0 %v471
    %v1004 = vpop.f32.mrf.mxu0
    %v1005 = vadd.f32 %v893, %v1004
    %1006 = vmatmul.f32.gmra.mxu0 %v479
    %v1007 = vpop.f32.mrf.mxu0
    %v1008 = vadd.f32 %v893, %v1007
    %1009 = vmatmul.f32.gmra.mxu0 %v487
    %v1010 = vpop.f32.mrf.mxu0
    %v1011 = vadd.f32 %v893, %v1010
    %1012 = vmatmul.f32.gmra.mxu0 %v495
    %v1013 = vpop.f32.mrf.mxu0
    %v1014 = vadd.f32 %v893, %v1013
    %1015 = vmatmul.f32.gmra.mxu0 %v503
    %v1016 = vpop.f32.mrf.mxu0
    %v1017 = vadd.f32 %v893, %v1016
    %1018 = vdwg.mxu0
    %1019 = vmatpush.msra.mxu0 %v888
    %1020 = vmatpush.msra.mxu0 %v886
    %1021 = vmatpush.msra.mxu0 %v884
    %1022 = vmatpush.msra.mxu0 %v882
    %1023 = vmatpush.msra.mxu0 %v880
    %1024 = vmatpush.msra.mxu0 %v878
    %1025 = vmatpush.msra.mxu0 %v876
    %1026 = vmatpush.msra.mxu0 %v874
    %1027 = vmatpush.msra.mxu0 %v872
    %1028 = vmatpush.msra.mxu0 %v870
    %1029 = vmatpush.msra.mxu0 %v868
    %1030 = vmatpush.msra.mxu0 %v866
    %1031 = vmatpush.msra.mxu0 %v864
    %1032 = vmatpush.msra.mxu0 %v862
    %1033 = vmatpush.msra.mxu0 %v860
    %1034 = vmatpush.msra.mxu0 %v858
    %1035 = vmatmul.f32.gmra.mxu0 %v448
    %v1036 = vpop.f32.mrf.mxu0
    %v1037 = vadd.f32 %v996, %v1036
    %1038 = vmatmul.f32.gmra.mxu0 %v456
    %v1039 = vpop.f32.mrf.mxu0
    %v1040 = vadd.f32 %v999, %v1039
    %1041 = vmatmul.f32.gmra.mxu0 %v464
    %v1042 = vpop.f32.mrf.mxu0
    %v1043 = vadd.f32 %v1002, %v1042
    %1044 = vmatmul.f32.gmra.mxu0 %v472
    %v1045 = vpop.f32.mrf.mxu0
    %v1046 = vadd.f32 %v1005, %v1045
    %1047 = vmatmul.f32.gmra.mxu0 %v480
    %v1048 = vpop.f32.mrf.mxu0
    %v1049 = vadd.f32 %v1008, %v1048
    %1050 = vmatmul.f32.gmra.mxu0 %v488
    %v1051 = vpop.f32.mrf.mxu0
    %v1052 = vadd.f32 %v1011, %v1051
    %1053 = vmatmul.f32.gmra.mxu0 %v496
    %v1054 = vpop.f32.mrf.mxu0
    %v1055 = vadd.f32 %v1014, %v1054
    %1056 = vmatmul.f32.gmra.mxu0 %v504
    %v1057 = vpop.f32.mrf.mxu0
    %v1058 = vadd.f32 %v1017, %v1057
    %1059 = vdwg.mxu0
    %v1060 = vmax.f32 %v955, 0.0
    %v1061 = vmax.f32 %v1037, 0.0
    %v1062 = vmax.f32 %v958, 0.0
    %v1063 = vmax.f32 %v1040, 0.0
    %v1064 = vmax.f32 %v961, 0.0
    %v1065 = vmax.f32 %v1043, 0.0
    %v1066 = vmax.f32 %v964, 0.0
    %v1067 = vmax.f32 %v1046, 0.0
    %v1068 = vmax.f32 %v967, 0.0
    %v1069 = vmax.f32 %v1049, 0.0
    %v1070 = vmax.f32 %v970, 0.0
    %v1071 = vmax.f32 %v1052, 0.0
    %v1072 = vmax.f32 %v973, 0.0
    %v1073 = vmax.f32 %v1055, 0.0
    %v1074 = vmax.f32 %v976, 0.0
    %v1075 = vmax.f32 %v1058, 0.0
    %s1076 = scalar_lea.vmem %s5, 2
    %v1077 = vld [vmem:[%s1076] sm:$0x3]
    %v1079 = vperm.slane %v1077, 0
    %v1080 = vperm.slane %v1077, 1
    %v1083 = vmul.f32 %v1060, %v1079
    %v1084 = vmul.f32 %v1061, %v1080
    %v1085 = vmul.f32 %v1062, %v1079
    %v1086 = vmul.f32 %v1063, %v1080
    %v1087 = vmul.f32 %v1064, %v1079
    %v1088 = vmul.f32 %v1065, %v1080
    %v1089 = vmul.f32 %v1066, %v1079
    %v1090 = vmul.f32 %v1067, %v1080
    %v1091 = vmul.f32 %v1068, %v1079
    %v1092 = vmul.f32 %v1069, %v1080
    %v1093 = vmul.f32 %v1070, %v1079
    %v1094 = vmul.f32 %v1071, %v1080
    %v1095 = vmul.f32 %v1072, %v1079
    %v1096 = vmul.f32 %v1073, %v1080
    %v1097 = vmul.f32 %v1074, %v1079
    %v1098 = vmul.f32 %v1075, %v1080
    %v1099 = vadd.f32 %v1083, %v1084
    %1100 = vadd.xlane.f32.xlu0 %v1099
    %v1101 = vpop.xlane.xlu0 %1100
    %v1102 = vadd.f32 %v1085, %v1086
    %1103 = vadd.xlane.f32.xlu0 %v1102
    %v1104 = vpop.xlane.xlu0 %1103
    %v1105 = vadd.f32 %v1087, %v1088
    %1106 = vadd.xlane.f32.xlu0 %v1105
    %v1107 = vpop.xlane.xlu0 %1106
    %v1108 = vadd.f32 %v1089, %v1090
    %1109 = vadd.xlane.f32.xlu0 %v1108
    %v1110 = vpop.xlane.xlu0 %1109
    %v1111 = vadd.f32 %v1091, %v1092
    %1112 = vadd.xlane.f32.xlu0 %v1111
    %v1113 = vpop.xlane.xlu0 %1112
    %v1114 = vadd.f32 %v1093, %v1094
    %1115 = vadd.xlane.f32.xlu0 %v1114
    %v1116 = vpop.xlane.xlu0 %1115
    %v1117 = vadd.f32 %v1095, %v1096
    %1118 = vadd.xlane.f32.xlu0 %v1117
    %v1119 = vpop.xlane.xlu0 %1118
    %v1120 = vadd.f32 %v1097, %v1098
    %1121 = vadd.xlane.f32.xlu0 %v1120
    %v1122 = vpop.xlane.xlu0 %1121
    %vm1123 = vcmp.eq.s32.totalorder %v510, 1
    %v1124 = vsel %vm1123, %v1101, 0.0
    %v1125 = vsel %vm1123, %v1104, 0.0
    %v1126 = vsel %vm1123, %v1107, 0.0
    %v1127 = vsel %vm1123, %v1110, 0.0
    %v1128 = vsel %vm1123, %v1113, 0.0
    %v1129 = vsel %vm1123, %v1116, 0.0
    %v1130 = vsel %vm1123, %v1119, 0.0
    %v1131 = vsel %vm1123, %v1122, 0.0
    %v1132 = vadd.f32 %v816, %v1124
    %v1133 = vadd.f32 %v817, %v1125
    %v1134 = vadd.f32 %v818, %v1126
    %v1135 = vadd.f32 %v819, %v1127
    %v1136 = vadd.f32 %v820, %v1128
    %v1137 = vadd.f32 %v821, %v1129
    %v1138 = vadd.f32 %v822, %v1130
    %v1139 = vadd.f32 %v823, %v1131
    %s1140 = scalar_lea.vmem [#allocation2], 1024
    %v1141 = vld [vmem:[%s1140] sm:$0xff]
    %v1142 = vld [vmem:[%s1140 + $0x8] sm:$0xff]
    %v1143 = vld [vmem:[%s1140 + $0x10] sm:$0xff]
    %v1144 = vld [vmem:[%s1140 + $0x18] sm:$0xff]
    %v1145 = vld [vmem:[%s1140 + $0x20] sm:$0xff]
    %v1146 = vld [vmem:[%s1140 + $0x28] sm:$0xff]
    %v1147 = vld [vmem:[%s1140 + $0x30] sm:$0xff]
    %v1148 = vld [vmem:[%s1140 + $0x38] sm:$0xff]
    %v1149 = vld [vmem:[%s1140 + $0x40] sm:$0xff]
    %v1150 = vld [vmem:[%s1140 + $0x48] sm:$0xff]
    %v1151 = vld [vmem:[%s1140 + $0x50] sm:$0xff]
    %v1152 = vld [vmem:[%s1140 + $0x58] sm:$0xff]
    %v1153 = vld [vmem:[%s1140 + $0x60] sm:$0xff]
    %v1154 = vld [vmem:[%s1140 + $0x68] sm:$0xff]
    %v1155 = vld [vmem:[%s1140 + $0x70] sm:$0xff]
    %v1156 = vld [vmem:[%s1140 + $0x78] sm:$0xff]
    %v1157 = vld [vmem:[%s1140 + $0x80] sm:$0xff]
    %v1158 = vld [vmem:[%s1140 + $0x88] sm:$0xff]
    %v1159 = vld [vmem:[%s1140 + $0x90] sm:$0xff]
    %v1160 = vld [vmem:[%s1140 + $0x98] sm:$0xff]
    %v1161 = vld [vmem:[%s1140 + $0xa0] sm:$0xff]
    %v1162 = vld [vmem:[%s1140 + $0xa8] sm:$0xff]
    %v1163 = vld [vmem:[%s1140 + $0xb0] sm:$0xff]
    %v1164 = vld [vmem:[%s1140 + $0xb8] sm:$0xff]
    %v1165 = vld [vmem:[%s1140 + $0xc0] sm:$0xff]
    %v1166 = vld [vmem:[%s1140 + $0xc8] sm:$0xff]
    %v1167 = vld [vmem:[%s1140 + $0xd0] sm:$0xff]
    %v1168 = vld [vmem:[%s1140 + $0xd8] sm:$0xff]
    %v1169 = vld [vmem:[%s1140 + $0xe0] sm:$0xff]
    %v1170 = vld [vmem:[%s1140 + $0xe8] sm:$0xff]
    %v1171 = vld [vmem:[%s1140 + $0xf0] sm:$0xff]
    %v1172 = vld [vmem:[%s1140 + $0xf8] sm:$0xff]
    %v1173 = vld [vmem:[%s1140 + $0x100] sm:$0xff]
    %v1174 = vld [vmem:[%s1140 + $0x108] sm:$0xff]
    %v1175 = vld [vmem:[%s1140 + $0x110] sm:$0xff]
    %v1176 = vld [vmem:[%s1140 + $0x118] sm:$0xff]
    %v1177 = vld [vmem:[%s1140 + $0x120] sm:$0xff]
    %v1178 = vld [vmem:[%s1140 + $0x128] sm:$0xff]
    %v1179 = vld [vmem:[%s1140 + $0x130] sm:$0xff]
    %v1180 = vld [vmem:[%s1140 + $0x138] sm:$0xff]
    %v1181 = vld [vmem:[%s1140 + $0x140] sm:$0xff]
    %v1182 = vld [vmem:[%s1140 + $0x148] sm:$0xff]
    %v1183 = vld [vmem:[%s1140 + $0x150] sm:$0xff]
    %v1184 = vld [vmem:[%s1140 + $0x158] sm:$0xff]
    %v1185 = vld [vmem:[%s1140 + $0x160] sm:$0xff]
    %v1186 = vld [vmem:[%s1140 + $0x168] sm:$0xff]
    %v1187 = vld [vmem:[%s1140 + $0x170] sm:$0xff]
    %v1188 = vld [vmem:[%s1140 + $0x178] sm:$0xff]
    %v1189 = vld [vmem:[%s1140 + $0x180] sm:$0xff]
    %v1190 = vld [vmem:[%s1140 + $0x188] sm:$0xff]
    %v1191 = vld [vmem:[%s1140 + $0x190] sm:$0xff]
    %v1192 = vld [vmem:[%s1140 + $0x198] sm:$0xff]
    %v1193 = vld [vmem:[%s1140 + $0x1a0] sm:$0xff]
    %v1194 = vld [vmem:[%s1140 + $0x1a8] sm:$0xff]
    %v1195 = vld [vmem:[%s1140 + $0x1b0] sm:$0xff]
    %v1196 = vld [vmem:[%s1140 + $0x1b8] sm:$0xff]
    %v1197 = vld [vmem:[%s1140 + $0x1c0] sm:$0xff]
    %v1198 = vld [vmem:[%s1140 + $0x1c8] sm:$0xff]
    %v1199 = vld [vmem:[%s1140 + $0x1d0] sm:$0xff]
    %v1200 = vld [vmem:[%s1140 + $0x1d8] sm:$0xff]
    %v1201 = vld [vmem:[%s1140 + $0x1e0] sm:$0xff]
    %v1202 = vld [vmem:[%s1140 + $0x1e8] sm:$0xff]
    %v1203 = vld [vmem:[%s1140 + $0x1f0] sm:$0xff]
    %v1204 = vld [vmem:[%s1140 + $0x1f8] sm:$0xff]
    %s1205 = scalar_lea.vmem %s4, 4
    %v1206 = vld [vmem:[%s1205] sm:$0x3]
    %v1208 = vperm.slane %v1206, 0
    %v1209 = vperm.slane %v1206, 1
    %1212 = vmatpush.msra.mxu0 %v1171
    %1213 = vmatpush.msra.mxu0 %v1169
    %1214 = vmatpush.msra.mxu0 %v1167
    %1215 = vmatpush.msra.mxu0 %v1165
    %1216 = vmatpush.msra.mxu0 %v1163
    %1217 = vmatpush.msra.mxu0 %v1161
    %1218 = vmatpush.msra.mxu0 %v1159
    %1219 = vmatpush.msra.mxu0 %v1157
    %1220 = vmatpush.msra.mxu0 %v1155
    %1221 = vmatpush.msra.mxu0 %v1153
    %1222 = vmatpush.msra.mxu0 %v1151
    %1223 = vmatpush.msra.mxu0 %v1149
    %1224 = vmatpush.msra.mxu0 %v1147
    %1225 = vmatpush.msra.mxu0 %v1145
    %1226 = vmatpush.msra.mxu0 %v1143
    %1227 = vmatpush.msra.mxu0 %v1141
    %1228 = vmatmul.f32.gmra.mxu0 %v449
    %v1229 = vpop.f32.mrf.mxu0
    %v1230 = vadd.f32 %v1208, %v1229
    %1231 = vmatmul.f32.gmra.mxu0 %v457
    %v1232 = vpop.f32.mrf.mxu0
    %v1233 = vadd.f32 %v1208, %v1232
    %1234 = vmatmul.f32.gmra.mxu0 %v465
    %v1235 = vpop.f32.mrf.mxu0
    %v1236 = vadd.f32 %v1208, %v1235
    %1237 = vmatmul.f32.gmra.mxu0 %v473
    %v1238 = vpop.f32.mrf.mxu0
    %v1239 = vadd.f32 %v1208, %v1238
    %1240 = vmatmul.f32.gmra.mxu0 %v481
    %v1241 = vpop.f32.mrf.mxu0
    %v1242 = vadd.f32 %v1208, %v1241
    %1243 = vmatmul.f32.gmra.mxu0 %v489
    %v1244 = vpop.f32.mrf.mxu0
    %v1245 = vadd.f32 %v1208, %v1244
    %1246 = vmatmul.f32.gmra.mxu0 %v497
    %v1247 = vpop.f32.mrf.mxu0
    %v1248 = vadd.f32 %v1208, %v1247
    %1249 = vmatmul.f32.gmra.mxu0 %v505
    %v1250 = vpop.f32.mrf.mxu0
    %v1251 = vadd.f32 %v1208, %v1250
    %1252 = vdwg.mxu0
    %1253 = vmatpush.msra.mxu0 %v1203
    %1254 = vmatpush.msra.mxu0 %v1201
    %1255 = vmatpush.msra.mxu0 %v1199
    %1256 = vmatpush.msra.mxu0 %v1197
    %1257 = vmatpush.msra.mxu0 %v1195
    %1258 = vmatpush.msra.mxu0 %v1193
    %1259 = vmatpush.msra.mxu0 %v1191
    %1260 = vmatpush.msra.mxu0 %v1189
    %1261 = vmatpush.msra.mxu0 %v1187
    %1262 = vmatpush.msra.mxu0 %v1185
    %1263 = vmatpush.msra.mxu0 %v1183
    %1264 = vmatpush.msra.mxu0 %v1181
    %1265 = vmatpush.msra.mxu0 %v1179
    %1266 = vmatpush.msra.mxu0 %v1177
    %1267 = vmatpush.msra.mxu0 %v1175
    %1268 = vmatpush.msra.mxu0 %v1173
    %1269 = vmatmul.f32.gmra.mxu0 %v450
    %v1270 = vpop.f32.mrf.mxu0
    %v1271 = vadd.f32 %v1230, %v1270
    %1272 = vmatmul.f32.gmra.mxu0 %v458
    %v1273 = vpop.f32.mrf.mxu0
    %v1274 = vadd.f32 %v1233, %v1273
    %1275 = vmatmul.f32.gmra.mxu0 %v466
    %v1276 = vpop.f32.mrf.mxu0
    %v1277 = vadd.f32 %v1236, %v1276
    %1278 = vmatmul.f32.gmra.mxu0 %v474
    %v1279 = vpop.f32.mrf.mxu0
    %v1280 = vadd.f32 %v1239, %v1279
    %1281 = vmatmul.f32.gmra.mxu0 %v482
    %v1282 = vpop.f32.mrf.mxu0
    %v1283 = vadd.f32 %v1242, %v1282
    %1284 = vmatmul.f32.gmra.mxu0 %v490
    %v1285 = vpop.f32.mrf.mxu0
    %v1286 = vadd.f32 %v1245, %v1285
    %1287 = vmatmul.f32.gmra.mxu0 %v498
    %v1288 = vpop.f32.mrf.mxu0
    %v1289 = vadd.f32 %v1248, %v1288
    %1290 = vmatmul.f32.gmra.mxu0 %v506
    %v1291 = vpop.f32.mrf.mxu0
    %v1292 = vadd.f32 %v1251, %v1291
    %1293 = vdwg.mxu0
    %1294 = vmatpush.msra.mxu0 %v1172
    %1295 = vmatpush.msra.mxu0 %v1170
    %1296 = vmatpush.msra.mxu0 %v1168
    %1297 = vmatpush.msra.mxu0 %v1166
    %1298 = vmatpush.msra.mxu0 %v1164
    %1299 = vmatpush.msra.mxu0 %v1162
    %1300 = vmatpush.msra.mxu0 %v1160
    %1301 = vmatpush.msra.mxu0 %v1158
    %1302 = vmatpush.msra.mxu0 %v1156
    %1303 = vmatpush.msra.mxu0 %v1154
    %1304 = vmatpush.msra.mxu0 %v1152
    %1305 = vmatpush.msra.mxu0 %v1150
    %1306 = vmatpush.msra.mxu0 %v1148
    %1307 = vmatpush.msra.mxu0 %v1146
    %1308 = vmatpush.msra.mxu0 %v1144
    %1309 = vmatpush.msra.mxu0 %v1142
    %1310 = vmatmul.f32.gmra.mxu0 %v449
    %v1311 = vpop.f32.mrf.mxu0
    %v1312 = vadd.f32 %v1209, %v1311
    %1313 = vmatmul.f32.gmra.mxu0 %v457
    %v1314 = vpop.f32.mrf.mxu0
    %v1315 = vadd.f32 %v1209, %v1314
    %1316 = vmatmul.f32.gmra.mxu0 %v465
    %v1317 = vpop.f32.mrf.mxu0
    %v1318 = vadd.f32 %v1209, %v1317
    %1319 = vmatmul.f32.gmra.mxu0 %v473
    %v1320 = vpop.f32.mrf.mxu0
    %v1321 = vadd.f32 %v1209, %v1320
    %1322 = vmatmul.f32.gmra.mxu0 %v481
    %v1323 = vpop.f32.mrf.mxu0
    %v1324 = vadd.f32 %v1209, %v1323
    %1325 = vmatmul.f32.gmra.mxu0 %v489
    %v1326 = vpop.f32.mrf.mxu0
    %v1327 = vadd.f32 %v1209, %v1326
    %1328 = vmatmul.f32.gmra.mxu0 %v497
    %v1329 = vpop.f32.mrf.mxu0
    %v1330 = vadd.f32 %v1209, %v1329
    %1331 = vmatmul.f32.gmra.mxu0 %v505
    %v1332 = vpop.f32.mrf.mxu0
    %v1333 = vadd.f32 %v1209, %v1332
    %1334 = vdwg.mxu0
    %1335 = vmatpush.msra.mxu0 %v1204
    %1336 = vmatpush.msra.mxu0 %v1202
    %1337 = vmatpush.msra.mxu0 %v1200
    %1338 = vmatpush.msra.mxu0 %v1198
    %1339 = vmatpush.msra.mxu0 %v1196
    %1340 = vmatpush.msra.mxu0 %v1194
    %1341 = vmatpush.msra.mxu0 %v1192
    %1342 = vmatpush.msra.mxu0 %v1190
    %1343 = vmatpush.msra.mxu0 %v1188
    %1344 = vmatpush.msra.mxu0 %v1186
    %1345 = vmatpush.msra.mxu0 %v1184
    %1346 = vmatpush.msra.mxu0 %v1182
    %1347 = vmatpush.msra.mxu0 %v1180
    %1348 = vmatpush.msra.mxu0 %v1178
    %1349 = vmatpush.msra.mxu0 %v1176
    %1350 = vmatpush.msra.mxu0 %v1174
    %1351 = vmatmul.f32.gmra.mxu0 %v450
    %v1352 = vpop.f32.mrf.mxu0
    %v1353 = vadd.f32 %v1312, %v1352
    %1354 = vmatmul.f32.gmra.mxu0 %v458
    %v1355 = vpop.f32.mrf.mxu0
    %v1356 = vadd.f32 %v1315, %v1355
    %1357 = vmatmul.f32.gmra.mxu0 %v466
    %v1358 = vpop.f32.mrf.mxu0
    %v1359 = vadd.f32 %v1318, %v1358
    %1360 = vmatmul.f32.gmra.mxu0 %v474
    %v1361 = vpop.f32.mrf.mxu0
    %v1362 = vadd.f32 %v1321, %v1361
    %1363 = vmatmul.f32.gmra.mxu0 %v482
    %v1364 = vpop.f32.mrf.mxu0
    %v1365 = vadd.f32 %v1324, %v1364
    %1366 = vmatmul.f32.gmra.mxu0 %v490
    %v1367 = vpop.f32.mrf.mxu0
    %v1368 = vadd.f32 %v1327, %v1367
    %1369 = vmatmul.f32.gmra.mxu0 %v498
    %v1370 = vpop.f32.mrf.mxu0
    %v1371 = vadd.f32 %v1330, %v1370
    %1372 = vmatmul.f32.gmra.mxu0 %v506
    %v1373 = vpop.f32.mrf.mxu0
    %v1374 = vadd.f32 %v1333, %v1373
    %1375 = vdwg.mxu0
    %v1376 = vmax.f32 %v1271, 0.0
    %v1377 = vmax.f32 %v1353, 0.0
    %v1378 = vmax.f32 %v1274, 0.0
    %v1379 = vmax.f32 %v1356, 0.0
    %v1380 = vmax.f32 %v1277, 0.0
    %v1381 = vmax.f32 %v1359, 0.0
    %v1382 = vmax.f32 %v1280, 0.0
    %v1383 = vmax.f32 %v1362, 0.0
    %v1384 = vmax.f32 %v1283, 0.0
    %v1385 = vmax.f32 %v1365, 0.0
    %v1386 = vmax.f32 %v1286, 0.0
    %v1387 = vmax.f32 %v1368, 0.0
    %v1388 = vmax.f32 %v1289, 0.0
    %v1389 = vmax.f32 %v1371, 0.0
    %v1390 = vmax.f32 %v1292, 0.0
    %v1391 = vmax.f32 %v1374, 0.0
    %s1392 = scalar_lea.vmem %s5, 4
    %v1393 = vld [vmem:[%s1392] sm:$0x3]
    %v1395 = vperm.slane %v1393, 0
    %v1396 = vperm.slane %v1393, 1
    %v1399 = vmul.f32 %v1376, %v1395
    %v1400 = vmul.f32 %v1377, %v1396
    %v1401 = vmul.f32 %v1378, %v1395
    %v1402 = vmul.f32 %v1379, %v1396
    %v1403 = vmul.f32 %v1380, %v1395
    %v1404 = vmul.f32 %v1381, %v1396
    %v1405 = vmul.f32 %v1382, %v1395
    %v1406 = vmul.f32 %v1383, %v1396
    %v1407 = vmul.f32 %v1384, %v1395
    %v1408 = vmul.f32 %v1385, %v1396
    %v1409 = vmul.f32 %v1386, %v1395
    %v1410 = vmul.f32 %v1387, %v1396
    %v1411 = vmul.f32 %v1388, %v1395
    %v1412 = vmul.f32 %v1389, %v1396
    %v1413 = vmul.f32 %v1390, %v1395
    %v1414 = vmul.f32 %v1391, %v1396
    %v1415 = vadd.f32 %v1399, %v1400
    %1416 = vadd.xlane.f32.xlu0 %v1415
    %v1417 = vpop.xlane.xlu0 %1416
    %v1418 = vadd.f32 %v1401, %v1402
    %1419 = vadd.xlane.f32.xlu0 %v1418
    %v1420 = vpop.xlane.xlu0 %1419
    %v1421 = vadd.f32 %v1403, %v1404
    %1422 = vadd.xlane.f32.xlu0 %v1421
    %v1423 = vpop.xlane.xlu0 %1422
    %v1424 = vadd.f32 %v1405, %v1406
    %1425 = vadd.xlane.f32.xlu0 %v1424
    %v1426 = vpop.xlane.xlu0 %1425
    %v1427 = vadd.f32 %v1407, %v1408
    %1428 = vadd.xlane.f32.xlu0 %v1427
    %v1429 = vpop.xlane.xlu0 %1428
    %v1430 = vadd.f32 %v1409, %v1410
    %1431 = vadd.xlane.f32.xlu0 %v1430
    %v1432 = vpop.xlane.xlu0 %1431
    %v1433 = vadd.f32 %v1411, %v1412
    %1434 = vadd.xlane.f32.xlu0 %v1433
    %v1435 = vpop.xlane.xlu0 %1434
    %v1436 = vadd.f32 %v1413, %v1414
    %1437 = vadd.xlane.f32.xlu0 %v1436
    %v1438 = vpop.xlane.xlu0 %1437
    %vm1439 = vcmp.eq.s32.totalorder %v510, 2
    %v1440 = vsel %vm1439, %v1417, 0.0
    %v1441 = vsel %vm1439, %v1420, 0.0
    %v1442 = vsel %vm1439, %v1423, 0.0
    %v1443 = vsel %vm1439, %v1426, 0.0
    %v1444 = vsel %vm1439, %v1429, 0.0
    %v1445 = vsel %vm1439, %v1432, 0.0
    %v1446 = vsel %vm1439, %v1435, 0.0
    %v1447 = vsel %vm1439, %v1438, 0.0
    %v1448 = vadd.f32 %v1132, %v1440
    %v1449 = vadd.f32 %v1133, %v1441
    %v1450 = vadd.f32 %v1134, %v1442
    %v1451 = vadd.f32 %v1135, %v1443
    %v1452 = vadd.f32 %v1136, %v1444
    %v1453 = vadd.f32 %v1137, %v1445
    %v1454 = vadd.f32 %v1138, %v1446
    %v1455 = vadd.f32 %v1139, %v1447
    %s1456 = scalar_lea.vmem [#allocation2], 1536
    %v1457 = vld [vmem:[%s1456] sm:$0xff]
    %v1458 = vld [vmem:[%s1456 + $0x8] sm:$0xff]
    %v1459 = vld [vmem:[%s1456 + $0x10] sm:$0xff]
    %v1460 = vld [vmem:[%s1456 + $0x18] sm:$0xff]
    %v1461 = vld [vmem:[%s1456 + $0x20] sm:$0xff]
    %v1462 = vld [vmem:[%s1456 + $0x28] sm:$0xff]
    %v1463 = vld [vmem:[%s1456 + $0x30] sm:$0xff]
    %v1464 = vld [vmem:[%s1456 + $0x38] sm:$0xff]
    %v1465 = vld [vmem:[%s1456 + $0x40] sm:$0xff]
    %v1466 = vld [vmem:[%s1456 + $0x48] sm:$0xff]
    %v1467 = vld [vmem:[%s1456 + $0x50] sm:$0xff]
    %v1468 = vld [vmem:[%s1456 + $0x58] sm:$0xff]
    %v1469 = vld [vmem:[%s1456 + $0x60] sm:$0xff]
    %v1470 = vld [vmem:[%s1456 + $0x68] sm:$0xff]
    %v1471 = vld [vmem:[%s1456 + $0x70] sm:$0xff]
    %v1472 = vld [vmem:[%s1456 + $0x78] sm:$0xff]
    %v1473 = vld [vmem:[%s1456 + $0x80] sm:$0xff]
    %v1474 = vld [vmem:[%s1456 + $0x88] sm:$0xff]
    %v1475 = vld [vmem:[%s1456 + $0x90] sm:$0xff]
    %v1476 = vld [vmem:[%s1456 + $0x98] sm:$0xff]
    %v1477 = vld [vmem:[%s1456 + $0xa0] sm:$0xff]
    %v1478 = vld [vmem:[%s1456 + $0xa8] sm:$0xff]
    %v1479 = vld [vmem:[%s1456 + $0xb0] sm:$0xff]
    %v1480 = vld [vmem:[%s1456 + $0xb8] sm:$0xff]
    %v1481 = vld [vmem:[%s1456 + $0xc0] sm:$0xff]
    %v1482 = vld [vmem:[%s1456 + $0xc8] sm:$0xff]
    %v1483 = vld [vmem:[%s1456 + $0xd0] sm:$0xff]
    %v1484 = vld [vmem:[%s1456 + $0xd8] sm:$0xff]
    %v1485 = vld [vmem:[%s1456 + $0xe0] sm:$0xff]
    %v1486 = vld [vmem:[%s1456 + $0xe8] sm:$0xff]
    %v1487 = vld [vmem:[%s1456 + $0xf0] sm:$0xff]
    %v1488 = vld [vmem:[%s1456 + $0xf8] sm:$0xff]
    %v1489 = vld [vmem:[%s1456 + $0x100] sm:$0xff]
    %v1490 = vld [vmem:[%s1456 + $0x108] sm:$0xff]
    %v1491 = vld [vmem:[%s1456 + $0x110] sm:$0xff]
    %v1492 = vld [vmem:[%s1456 + $0x118] sm:$0xff]
    %v1493 = vld [vmem:[%s1456 + $0x120] sm:$0xff]
    %v1494 = vld [vmem:[%s1456 + $0x128] sm:$0xff]
    %v1495 = vld [vmem:[%s1456 + $0x130] sm:$0xff]
    %v1496 = vld [vmem:[%s1456 + $0x138] sm:$0xff]
    %v1497 = vld [vmem:[%s1456 + $0x140] sm:$0xff]
    %v1498 = vld [vmem:[%s1456 + $0x148] sm:$0xff]
    %v1499 = vld [vmem:[%s1456 + $0x150] sm:$0xff]
    %v1500 = vld [vmem:[%s1456 + $0x158] sm:$0xff]
    %v1501 = vld [vmem:[%s1456 + $0x160] sm:$0xff]
    %v1502 = vld [vmem:[%s1456 + $0x168] sm:$0xff]
    %v1503 = vld [vmem:[%s1456 + $0x170] sm:$0xff]
    %v1504 = vld [vmem:[%s1456 + $0x178] sm:$0xff]
    %v1505 = vld [vmem:[%s1456 + $0x180] sm:$0xff]
    %v1506 = vld [vmem:[%s1456 + $0x188] sm:$0xff]
    %v1507 = vld [vmem:[%s1456 + $0x190] sm:$0xff]
    %v1508 = vld [vmem:[%s1456 + $0x198] sm:$0xff]
    %v1509 = vld [vmem:[%s1456 + $0x1a0] sm:$0xff]
    %v1510 = vld [vmem:[%s1456 + $0x1a8] sm:$0xff]
    %v1511 = vld [vmem:[%s1456 + $0x1b0] sm:$0xff]
    %v1512 = vld [vmem:[%s1456 + $0x1b8] sm:$0xff]
    %v1513 = vld [vmem:[%s1456 + $0x1c0] sm:$0xff]
    %v1514 = vld [vmem:[%s1456 + $0x1c8] sm:$0xff]
    %v1515 = vld [vmem:[%s1456 + $0x1d0] sm:$0xff]
    %v1516 = vld [vmem:[%s1456 + $0x1d8] sm:$0xff]
    %v1517 = vld [vmem:[%s1456 + $0x1e0] sm:$0xff]
    %v1518 = vld [vmem:[%s1456 + $0x1e8] sm:$0xff]
    %v1519 = vld [vmem:[%s1456 + $0x1f0] sm:$0xff]
    %v1520 = vld [vmem:[%s1456 + $0x1f8] sm:$0xff]
    %s1521 = scalar_lea.vmem %s4, 6
    %v1522 = vld [vmem:[%s1521] sm:$0x3]
    %v1524 = vperm.slane %v1522, 0
    %v1525 = vperm.slane %v1522, 1
    %1528 = vmatpush.msra.mxu0 %v1487
    %1529 = vmatpush.msra.mxu0 %v1485
    %1530 = vmatpush.msra.mxu0 %v1483
    %1531 = vmatpush.msra.mxu0 %v1481
    %1532 = vmatpush.msra.mxu0 %v1479
    %1533 = vmatpush.msra.mxu0 %v1477
    %1534 = vmatpush.msra.mxu0 %v1475
    %1535 = vmatpush.msra.mxu0 %v1473
    %1536 = vmatpush.msra.mxu0 %v1471
    %1537 = vmatpush.msra.mxu0 %v1469
    %1538 = vmatpush.msra.mxu0 %v1467
    %1539 = vmatpush.msra.mxu0 %v1465
    %1540 = vmatpush.msra.mxu0 %v1463
    %1541 = vmatpush.msra.mxu0 %v1461
    %1542 = vmatpush.msra.mxu0 %v1459
    %1543 = vmatpush.msra.mxu0 %v1457
    %1544 = vmatmul.f32.gmra.mxu0 %v451
    %v1545 = vpop.f32.mrf.mxu0
    %v1546 = vadd.f32 %v1524, %v1545
    %1547 = vmatmul.f32.gmra.mxu0 %v459
    %v1548 = vpop.f32.mrf.mxu0
    %v1549 = vadd.f32 %v1524, %v1548
    %1550 = vmatmul.f32.gmra.mxu0 %v467
    %v1551 = vpop.f32.mrf.mxu0
    %v1552 = vadd.f32 %v1524, %v1551
    %1553 = vmatmul.f32.gmra.mxu0 %v475
    %v1554 = vpop.f32.mrf.mxu0
    %v1555 = vadd.f32 %v1524, %v1554
    %1556 = vmatmul.f32.gmra.mxu0 %v483
    %v1557 = vpop.f32.mrf.mxu0
    %v1558 = vadd.f32 %v1524, %v1557
    %1559 = vmatmul.f32.gmra.mxu0 %v491
    %v1560 = vpop.f32.mrf.mxu0
    %v1561 = vadd.f32 %v1524, %v1560
    %1562 = vmatmul.f32.gmra.mxu0 %v499
    %v1563 = vpop.f32.mrf.mxu0
    %v1564 = vadd.f32 %v1524, %v1563
    %1565 = vmatmul.f32.gmra.mxu0 %v507
    %v1566 = vpop.f32.mrf.mxu0
    %v1567 = vadd.f32 %v1524, %v1566
    %1568 = vdwg.mxu0
    %1569 = vmatpush.msra.mxu0 %v1519
    %1570 = vmatpush.msra.mxu0 %v1517
    %1571 = vmatpush.msra.mxu0 %v1515
    %1572 = vmatpush.msra.mxu0 %v1513
    %1573 = vmatpush.msra.mxu0 %v1511
    %1574 = vmatpush.msra.mxu0 %v1509
    %1575 = vmatpush.msra.mxu0 %v1507
    %1576 = vmatpush.msra.mxu0 %v1505
    %1577 = vmatpush.msra.mxu0 %v1503
    %1578 = vmatpush.msra.mxu0 %v1501
    %1579 = vmatpush.msra.mxu0 %v1499
    %1580 = vmatpush.msra.mxu0 %v1497
    %1581 = vmatpush.msra.mxu0 %v1495
    %1582 = vmatpush.msra.mxu0 %v1493
    %1583 = vmatpush.msra.mxu0 %v1491
    %1584 = vmatpush.msra.mxu0 %v1489
    %1585 = vmatmul.f32.gmra.mxu0 %v452
    %v1586 = vpop.f32.mrf.mxu0
    %v1587 = vadd.f32 %v1546, %v1586
    %1588 = vmatmul.f32.gmra.mxu0 %v460
    %v1589 = vpop.f32.mrf.mxu0
    %v1590 = vadd.f32 %v1549, %v1589
    %1591 = vmatmul.f32.gmra.mxu0 %v468
    %v1592 = vpop.f32.mrf.mxu0
    %v1593 = vadd.f32 %v1552, %v1592
    %1594 = vmatmul.f32.gmra.mxu0 %v476
    %v1595 = vpop.f32.mrf.mxu0
    %v1596 = vadd.f32 %v1555, %v1595
    %1597 = vmatmul.f32.gmra.mxu0 %v484
    %v1598 = vpop.f32.mrf.mxu0
    %v1599 = vadd.f32 %v1558, %v1598
    %1600 = vmatmul.f32.gmra.mxu0 %v492
    %v1601 = vpop.f32.mrf.mxu0
    %v1602 = vadd.f32 %v1561, %v1601
    %1603 = vmatmul.f32.gmra.mxu0 %v500
    %v1604 = vpop.f32.mrf.mxu0
    %v1605 = vadd.f32 %v1564, %v1604
    %1606 = vmatmul.f32.gmra.mxu0 %v508
    %v1607 = vpop.f32.mrf.mxu0
    %v1608 = vadd.f32 %v1567, %v1607
    %1609 = vdwg.mxu0
    %1610 = vmatpush.msra.mxu0 %v1488
    %1611 = vmatpush.msra.mxu0 %v1486
    %1612 = vmatpush.msra.mxu0 %v1484
    %1613 = vmatpush.msra.mxu0 %v1482
    %1614 = vmatpush.msra.mxu0 %v1480
    %1615 = vmatpush.msra.mxu0 %v1478
    %1616 = vmatpush.msra.mxu0 %v1476
    %1617 = vmatpush.msra.mxu0 %v1474
    %1618 = vmatpush.msra.mxu0 %v1472
    %1619 = vmatpush.msra.mxu0 %v1470
    %1620 = vmatpush.msra.mxu0 %v1468
    %1621 = vmatpush.msra.mxu0 %v1466
    %1622 = vmatpush.msra.mxu0 %v1464
    %1623 = vmatpush.msra.mxu0 %v1462
    %1624 = vmatpush.msra.mxu0 %v1460
    %1625 = vmatpush.msra.mxu0 %v1458
    %1626 = vmatmul.f32.gmra.mxu0 %v451
    %v1627 = vpop.f32.mrf.mxu0
    %v1628 = vadd.f32 %v1525, %v1627
    %1629 = vmatmul.f32.gmra.mxu0 %v459
    %v1630 = vpop.f32.mrf.mxu0
    %v1631 = vadd.f32 %v1525, %v1630
    %1632 = vmatmul.f32.gmra.mxu0 %v467
    %v1633 = vpop.f32.mrf.mxu0
    %v1634 = vadd.f32 %v1525, %v1633
    %1635 = vmatmul.f32.gmra.mxu0 %v475
    %v1636 = vpop.f32.mrf.mxu0
    %v1637 = vadd.f32 %v1525, %v1636
    %1638 = vmatmul.f32.gmra.mxu0 %v483
    %v1639 = vpop.f32.mrf.mxu0
    %v1640 = vadd.f32 %v1525, %v1639
    %1641 = vmatmul.f32.gmra.mxu0 %v491
    %v1642 = vpop.f32.mrf.mxu0
    %v1643 = vadd.f32 %v1525, %v1642
    %1644 = vmatmul.f32.gmra.mxu0 %v499
    %v1645 = vpop.f32.mrf.mxu0
    %v1646 = vadd.f32 %v1525, %v1645
    %1647 = vmatmul.f32.gmra.mxu0 %v507
    %v1648 = vpop.f32.mrf.mxu0
    %v1649 = vadd.f32 %v1525, %v1648
    %1650 = vdwg.mxu0
    %1651 = vmatpush.msra.mxu0 %v1520
    %1652 = vmatpush.msra.mxu0 %v1518
    %1653 = vmatpush.msra.mxu0 %v1516
    %1654 = vmatpush.msra.mxu0 %v1514
    %1655 = vmatpush.msra.mxu0 %v1512
    %1656 = vmatpush.msra.mxu0 %v1510
    %1657 = vmatpush.msra.mxu0 %v1508
    %1658 = vmatpush.msra.mxu0 %v1506
    %1659 = vmatpush.msra.mxu0 %v1504
    %1660 = vmatpush.msra.mxu0 %v1502
    %1661 = vmatpush.msra.mxu0 %v1500
    %1662 = vmatpush.msra.mxu0 %v1498
    %1663 = vmatpush.msra.mxu0 %v1496
    %1664 = vmatpush.msra.mxu0 %v1494
    %1665 = vmatpush.msra.mxu0 %v1492
    %1666 = vmatpush.msra.mxu0 %v1490
    %1667 = vmatmul.f32.gmra.mxu0 %v452
    %v1668 = vpop.f32.mrf.mxu0
    %v1669 = vadd.f32 %v1628, %v1668
    %1670 = vmatmul.f32.gmra.mxu0 %v460
    %v1671 = vpop.f32.mrf.mxu0
    %v1672 = vadd.f32 %v1631, %v1671
    %1673 = vmatmul.f32.gmra.mxu0 %v468
    %v1674 = vpop.f32.mrf.mxu0
    %v1675 = vadd.f32 %v1634, %v1674
    %1676 = vmatmul.f32.gmra.mxu0 %v476
    %v1677 = vpop.f32.mrf.mxu0
    %v1678 = vadd.f32 %v1637, %v1677
    %1679 = vmatmul.f32.gmra.mxu0 %v484
    %v1680 = vpop.f32.mrf.mxu0
    %v1681 = vadd.f32 %v1640, %v1680
    %1682 = vmatmul.f32.gmra.mxu0 %v492
    %v1683 = vpop.f32.mrf.mxu0
    %v1684 = vadd.f32 %v1643, %v1683
    %1685 = vmatmul.f32.gmra.mxu0 %v500
    %v1686 = vpop.f32.mrf.mxu0
    %v1687 = vadd.f32 %v1646, %v1686
    %1688 = vmatmul.f32.gmra.mxu0 %v508
    %v1689 = vpop.f32.mrf.mxu0
    %v1690 = vadd.f32 %v1649, %v1689
    %1691 = vdwg.mxu0
    %v1692 = vmax.f32 %v1587, 0.0
    %v1693 = vmax.f32 %v1669, 0.0
    %v1694 = vmax.f32 %v1590, 0.0
    %v1695 = vmax.f32 %v1672, 0.0
    %v1696 = vmax.f32 %v1593, 0.0
    %v1697 = vmax.f32 %v1675, 0.0
    %v1698 = vmax.f32 %v1596, 0.0
    %v1699 = vmax.f32 %v1678, 0.0
    %v1700 = vmax.f32 %v1599, 0.0
    %v1701 = vmax.f32 %v1681, 0.0
    %v1702 = vmax.f32 %v1602, 0.0
    %v1703 = vmax.f32 %v1684, 0.0
    %v1704 = vmax.f32 %v1605, 0.0
    %v1705 = vmax.f32 %v1687, 0.0
    %v1706 = vmax.f32 %v1608, 0.0
    %v1707 = vmax.f32 %v1690, 0.0
    %s1708 = scalar_lea.vmem %s5, 6
    %v1709 = vld [vmem:[%s1708] sm:$0x3]
    %v1711 = vperm.slane %v1709, 0
    %v1712 = vperm.slane %v1709, 1
    %v1715 = vmul.f32 %v1692, %v1711
    %v1716 = vmul.f32 %v1693, %v1712
    %v1717 = vmul.f32 %v1694, %v1711
    %v1718 = vmul.f32 %v1695, %v1712
    %v1719 = vmul.f32 %v1696, %v1711
    %v1720 = vmul.f32 %v1697, %v1712
    %v1721 = vmul.f32 %v1698, %v1711
    %v1722 = vmul.f32 %v1699, %v1712
    %v1723 = vmul.f32 %v1700, %v1711
    %v1724 = vmul.f32 %v1701, %v1712
    %v1725 = vmul.f32 %v1702, %v1711
    %v1726 = vmul.f32 %v1703, %v1712
    %v1727 = vmul.f32 %v1704, %v1711
    %v1728 = vmul.f32 %v1705, %v1712
    %v1729 = vmul.f32 %v1706, %v1711
    %v1730 = vmul.f32 %v1707, %v1712
    %v1731 = vadd.f32 %v1715, %v1716
    %1732 = vadd.xlane.f32.xlu0 %v1731
    %v1733 = vpop.xlane.xlu0 %1732
    %v1734 = vadd.f32 %v1717, %v1718
    %1735 = vadd.xlane.f32.xlu0 %v1734
    %v1736 = vpop.xlane.xlu0 %1735
    %v1737 = vadd.f32 %v1719, %v1720
    %1738 = vadd.xlane.f32.xlu0 %v1737
    %v1739 = vpop.xlane.xlu0 %1738
    %v1740 = vadd.f32 %v1721, %v1722
    %1741 = vadd.xlane.f32.xlu0 %v1740
    %v1742 = vpop.xlane.xlu0 %1741
    %v1743 = vadd.f32 %v1723, %v1724
    %1744 = vadd.xlane.f32.xlu0 %v1743
    %v1745 = vpop.xlane.xlu0 %1744
    %v1746 = vadd.f32 %v1725, %v1726
    %1747 = vadd.xlane.f32.xlu0 %v1746
    %v1748 = vpop.xlane.xlu0 %1747
    %v1749 = vadd.f32 %v1727, %v1728
    %1750 = vadd.xlane.f32.xlu0 %v1749
    %v1751 = vpop.xlane.xlu0 %1750
    %v1752 = vadd.f32 %v1729, %v1730
    %1753 = vadd.xlane.f32.xlu0 %v1752
    %v1754 = vpop.xlane.xlu0 %1753
    %vm1755 = vcmp.eq.s32.totalorder %v510, 3
    %v1756 = vsel %vm1755, %v1733, 0.0
    %v1757 = vsel %vm1755, %v1736, 0.0
    %v1758 = vsel %vm1755, %v1739, 0.0
    %v1759 = vsel %vm1755, %v1742, 0.0
    %v1760 = vsel %vm1755, %v1745, 0.0
    %v1761 = vsel %vm1755, %v1748, 0.0
    %v1762 = vsel %vm1755, %v1751, 0.0
    %v1763 = vsel %vm1755, %v1754, 0.0
    %v1764 = vadd.f32 %v1448, %v1756
    %v1765 = vadd.f32 %v1449, %v1757
    %v1766 = vadd.f32 %v1450, %v1758
    %v1767 = vadd.f32 %v1451, %v1759
    %v1768 = vadd.f32 %v1452, %v1760
    %v1769 = vadd.f32 %v1453, %v1761
    %v1770 = vadd.f32 %v1454, %v1762
    %v1771 = vadd.f32 %v1455, %v1763
    %v1772 = vld [vmem:[%s6] sm:$0x1]
    %v1774 = vperm.slane %v1772, 0
    %v1776 = vadd.f32 %v1764, %v1774
    %v1777 = vadd.f32 %v1765, %v1774
    %v1778 = vadd.f32 %v1766, %v1774
    %v1779 = vadd.f32 %v1767, %v1774
    %v1780 = vadd.f32 %v1768, %v1774
    %v1781 = vadd.f32 %v1769, %v1774
    %v1782 = vadd.f32 %v1770, %v1774
    %v1783 = vadd.f32 %v1771, %v1774
    %vm1784 = vcmask 31744
    %1785 = vst.msk [vmem:[%s7] sm:$0xff] %vm1784, %v1776
    %1786 = vst.msk [vmem:[%s7 + $0x8] sm:$0xff] %vm1784, %v1777
    %1787 = vst.msk [vmem:[%s7 + $0x10] sm:$0xff] %vm1784, %v1778
    %1788 = vst.msk [vmem:[%s7 + $0x18] sm:$0xff] %vm1784, %v1779
    %1789 = vst.msk [vmem:[%s7 + $0x20] sm:$0xff] %vm1784, %v1780
    %1790 = vst.msk [vmem:[%s7 + $0x28] sm:$0xff] %vm1784, %v1781
    %1791 = vst.msk [vmem:[%s7 + $0x30] sm:$0xff] %vm1784, %v1782
    %1792 = vst.msk [vmem:[%s7 + $0x38] sm:$0xff] %vm1784, %v1783
    // Predicated region
    $region34: #{critic_q_forward.1} parent=1 // pred_check
      _
    $region35: #{critic_q_forward.1} parent=1 // pred_check_branch
      %1794 = sbr.rel (0) target = $region37
    $region36: #{critic_q_forward.1} parent=1 // pred_region
      _
    $region37: #{critic_q_forward.1} parent=1 // pred_fallthru
      _
    // Predicated region
    $region38: #{critic_q_forward.1} parent=1 // pred_check
      _
    $region39: #{critic_q_forward.1} parent=1 // pred_check_branch
      %1796 = sbr.rel (0) target = $region41
    $region40: #{critic_q_forward.1} parent=1 // pred_region
      _
    $region41: #{critic_q_forward.1} parent=1 // pred_fallthru
      _
    %1797 = vsyncpa [#allocation3], 1

</llo_original>
